<compile_context>
chip_gen: v7x
topology: tpu7x:2x2x1
jax: 0.10.0
libtpu: 0.0.40
codegen_flags: <defaults>
</compile_context>

<pallas_src>
import functools

import jax
import jax.numpy as jnp
from jax.experimental import pallas as pl
from jax.experimental.pallas import tpu as pltpu

IN_DIM = 2            # input point dimension (k of the input STN)
C1, C2, C3 = 64, 128, 1024
F1, F2 = 512, 256
K = 2                 # STN k -> 2x2 transform
BN_EPS = 1e-5


def _round_up(v, m):
    return ((v + m - 1) // m) * m


# --------------------------------------------------------------------------------------
# Kernel 1: per-point MLP (Conv1d k=1 stack, BN folded) + global max pool over points.
#           Points on sublanes, channels on lanes.
# --------------------------------------------------------------------------------------
def pointmlp_max_kernel(x_ref, w1_ref, b1_ref, w2_ref, b2_ref, w3_ref, b3_ref,
                        o_ref, *, last_tanh):
    """x_ref : (1, T, Cin)        o_ref : (1, 1, C3)  running max, resident across point axis
       wN_ref: (Cin, Cout)        bN_ref: (1, Cout)   (BN already folded in)
    """
    l = pl.program_id(1)

    x = x_ref[0]                                                            # (T, Cin)
    h = jnp.tanh(jnp.dot(x, w1_ref[...],
                         preferred_element_type=jnp.float32) + b1_ref[...])  # (T, C1)
    h = jnp.tanh(jnp.dot(h, w2_ref[...],
                         preferred_element_type=jnp.float32) + b2_ref[...])  # (T, C2)
    h = jnp.dot(h, w3_ref[...],
                preferred_element_type=jnp.float32) + b3_ref[...]            # (T, C3)
    if last_tanh:
        h = jnp.tanh(h)

    tile_max = jnp.max(h, axis=0, keepdims=True)                            # (1, C3) lane-dense

    @pl.when(l == 0)
    def _():
        o_ref[0] = tile_max

    @pl.when(l > 0)
    def _():
        o_ref[0] = jnp.maximum(o_ref[0], tile_max)


def pointwise_mlp_max(x_pts, w1, b1, w2, b2, w3, b3, *, last_tanh, tile_pts=1024):
    """x_pts: (B, L, Cin) f32 (points-major) -> (B, C3) max-pooled per-point features."""
    B, L, Cin = x_pts.shape
    c1, c2, c3 = w1.shape[1], w2.shape[1], w3.shape[1]

    tile = min(tile_pts, _round_up(L, 8))
    Lp = _round_up(L, tile)
    if Lp != L:
        # edge padding: duplicated points cannot change the max
        x_pts = jnp.pad(x_pts, ((0, 0), (0, Lp - L), (0, 0)), mode="edge")

    grid = (B, Lp // tile)
    kernel = functools.partial(pointmlp_max_kernel, last_tanh=last_tanh)

    out = pl.pallas_call(
        kernel,
        out_shape=jax.ShapeDtypeStruct((B, 1, c3), jnp.float32),
        grid_spec=pltpu.PrefetchScalarGridSpec(
            num_scalar_prefetch=0,
            grid=grid,
            in_specs=[
                pl.BlockSpec((1, tile, Cin), lambda b, l: (b, l, 0)),
                pl.BlockSpec((Cin, c1), lambda b, l: (0, 0)),
                pl.BlockSpec((1, c1), lambda b, l: (0, 0)),
                pl.BlockSpec((c1, c2), lambda b, l: (0, 0)),
                pl.BlockSpec((1, c2), lambda b, l: (0, 0)),
                pl.BlockSpec((c2, c3), lambda b, l: (0, 0)),
                pl.BlockSpec((1, c3), lambda b, l: (0, 0)),
            ],
            out_specs=pl.BlockSpec((1, 1, c3), lambda b, l: (b, 0, 0)),
        ),
        compiler_params=pltpu.CompilerParams(
            dimension_semantics=("parallel", "arbitrary"),
            vmem_limit_bytes=32 * 1024 * 1024,
        ),
    )(x_pts, w1, b1, w2, b2, w3, b3)
    return out[:, 0, :]


# --------------------------------------------------------------------------------------
# Kernel 2: STN fully-connected head 1024 -> 512 -> 256 -> k*k (tiny, single invocation).
# --------------------------------------------------------------------------------------
def stn_head_kernel(x_ref, w1_ref, b1_ref, w2_ref, b2_ref, w3_ref, b3_ref, o_ref):
    h = jnp.tanh(jnp.dot(x_ref[...], w1_ref[...],
                         preferred_element_type=jnp.float32) + b1_ref[...])
    h = jnp.tanh(jnp.dot(h, w2_ref[...],
                         preferred_element_type=jnp.float32) + b2_ref[...])
    o_ref[...] = jnp.dot(h, w3_ref[...],
                         preferred_element_type=jnp.float32) + b3_ref[...]


def stn_head(g, fc1, fc2, fc3):
    (w1, b1), (w2, b2), (w3, b3) = fc1, fc2, fc3
    B = g.shape[0]
    return pl.pallas_call(
        stn_head_kernel,
        out_shape=jax.ShapeDtypeStruct((B, w3.shape[1]), jnp.float32),
    )(g, w1, b1.reshape(1, -1), w2, b2.reshape(1, -1), w3, b3.reshape(1, -1))


# --------------------------------------------------------------------------------------
# Parameter handling
# --------------------------------------------------------------------------------------
def fold_bn_t(w, b, bn, eps=BN_EPS):
    """Fold eval-mode BatchNorm1d into a k=1 Conv1d, then transpose for the
    points-major kernel: returns W' (Cin, Cout), b' (1, Cout)."""
    gamma, beta, mean, var = bn
    s = gamma / jnp.sqrt(var + eps)
    w_f = (w * s[:, None]).T                      # (Cin, Cout)
    b_f = (s * (b - mean) + beta).reshape(1, -1)  # (1, Cout)
    return w_f, b_f


def _xavier(key, fan_in, fan_out, shape):
    std = jnp.sqrt(2.0 / (fan_in + fan_out))
    return (std * jax.random.normal(key, shape, dtype=jnp.float32)).astype(jnp.float32)


def _bn_init(key, c):
    kg, kb, km, kv = jax.random.split(key, 4)
    gamma = 1.0 + 0.1 * jax.random.normal(kg, (c,), dtype=jnp.float32)
    beta = 0.1 * jax.random.normal(kb, (c,), dtype=jnp.float32)
    mean = 0.1 * jax.random.normal(km, (c,), dtype=jnp.float32)
    var = jax.random.uniform(kv, (c,), minval=0.5, maxval=1.5, dtype=jnp.float32)
    return gamma, beta, mean, var


def init_params(key):
    it = iter(jax.random.split(key, 24))

    def conv(cin, cout):  # Conv1d(k=1) weight stored as (Cout, Cin)
        w = _xavier(next(it), cin, cout, (cout, cin))
        b = 0.1 * jax.random.normal(next(it), (cout,), dtype=jnp.float32)
        return w, b

    def linear(fin, fout):  # Linear weight stored transposed, (in, out), for x @ W
        w = _xavier(next(it), fin, fout, (fin, fout))
        b = 0.1 * jax.random.normal(next(it), (fout,), dtype=jnp.float32)
        return w, b

    p = {}
    p["stn_conv1"] = conv(IN_DIM, C1)
    p["stn_conv2"] = conv(C1, C2)
    p["stn_conv3"] = conv(C2, C3)
    p["stn_bn1"] = _bn_init(next(it), C1)
    p["stn_bn2"] = _bn_init(next(it), C2)
    p["stn_bn3"] = _bn_init(next(it), C3)
    p["stn_fc1"] = linear(C3, F1)
    p["stn_fc2"] = linear(F1, F2)
    p["stn_fc3"] = linear(F2, K * K)
    p["conv1"] = conv(IN_DIM, C1)
    p["conv2"] = conv(C1, C2)
    p["conv3"] = conv(C2, C3)
    p["bn1"] = _bn_init(next(it), C1)
    p["bn2"] = _bn_init(next(it), C2)
    p["bn3"] = _bn_init(next(it), C3)
    return p


# --------------------------------------------------------------------------------------
# Full forward (Pallas) and pure-JAX reference
# --------------------------------------------------------------------------------------
def pointnetfeat_v2_forward(x, params, *, tile_pts=1024):
    """x: (B, 2, L) -> (global_feat (B,1024), trans (B,2,2), trans_feat=None)."""
    hp = jax.lax.Precision.HIGHEST

    # --- STN(k=2): transform prediction ---
    sw1, sb1 = fold_bn_t(*params["stn_conv1"], params["stn_bn1"])
    sw2, sb2 = fold_bn_t(*params["stn_conv2"], params["stn_bn2"])
    sw3, sb3 = fold_bn_t(*params["stn_conv3"], params["stn_bn3"])
    x_pts = jnp.transpose(x, (0, 2, 1))                       # (B, L, 2) points-major
    g = pointwise_mlp_max(x_pts, sw1, sb1, sw2, sb2, sw3, sb3,
                          last_tanh=True, tile_pts=tile_pts)
    head = stn_head(g, params["stn_fc1"], params["stn_fc2"], params["stn_fc3"])
    iden = jnp.eye(K, dtype=jnp.float32).reshape(1, K * K)
    trans = (head + iden).reshape(-1, K, K)

    # --- apply the 2x2 input transform directly in points-major layout (tiny; JAX glue) ---
    x_t_pts = jnp.einsum("bcl,bcj->blj", x, trans, precision=hp)   # (B, L, 2)

    # --- main per-point MLP + global max pool (last layer: BN only, no tanh) ---
    mw1, mb1 = fold_bn_t(*params["conv1"], params["bn1"])
    mw2, mb2 = fold_bn_t(*params["conv2"], params["bn2"])
    mw3, mb3 = fold_bn_t(*params["conv3"], params["bn3"])
    gfeat = pointwise_mlp_max(x_t_pts, mw1, mb1, mw2, mb2, mw3, mb3,
                              last_tanh=False, tile_pts=tile_pts)
    # global_feat=True, feature_transform=False
    return gfeat, trans, None


def _conv1d_ref(x, w, b):
    return jnp.einsum("oc,bcl->bol", w, x,
                      precision=jax.lax.Precision.HIGHEST) + b[None, :, None]


def _bn_ref(x, bn):
    gamma, beta, mean, var = bn
    s = gamma / jnp.sqrt(var + BN_EPS)
    return x * s[None, :, None] + (beta - mean * s)[None, :, None]


def reference_forward(x, params):
    hp = jax.lax.Precision.HIGHEST
    # STN
    h = jnp.tanh(_bn_ref(_conv1d_ref(x, *params["stn_conv1"]), params["stn_bn1"]))
    h = jnp.tanh(_bn_ref(_conv1d_ref(h, *params["stn_conv2"]), params["stn_bn2"]))
    h = jnp.tanh(_bn_ref(_conv1d_ref(h, *params["stn_conv3"]), params["stn_bn3"]))
    g = jnp.max(h, axis=2)
    w, b = params["stn_fc1"]; g = jnp.tanh(jnp.dot(g, w, precision=hp) + b)
    w, b = params["stn_fc2"]; g = jnp.tanh(jnp.dot(g, w, precision=hp) + b)
    w, b = params["stn_fc3"]; g = jnp.dot(g, w, precision=hp) + b
    trans = (g + jnp.eye(K, dtype=jnp.float32).reshape(1, K * K)).reshape(-1, K, K)
    # main path
    x_t = jnp.einsum("bcl,bcj->bjl", x, trans, precision=hp)
    h = jnp.tanh(_bn_ref(_conv1d_ref(x_t, *params["conv1"]), params["bn1"]))
    h = jnp.tanh(_bn_ref(_conv1d_ref(h, *params["conv2"]), params["bn2"]))
    h = _bn_ref(_conv1d_ref(h, *params["conv3"]), params["bn3"])
    gfeat = jnp.max(h, axis=2)
    return gfeat, trans


if __name__ == "__main__":
    key = jax.random.PRNGKey(0)
    kx, kp = jax.random.split(key)

    # small input consistent with the module: batch=2, 2-D points, 200 points
    B, L = 2, 200
    x = jax.random.normal(kx, (B, IN_DIM, L), dtype=jnp.float32)
    params = init_params(kp)

    gfeat, trans, trans_feat = pointnetfeat_v2_forward(x, params)
    gfeat = jax.block_until_ready(gfeat)
    trans = jax.block_until_ready(trans)

    gfeat_ref, trans_ref = reference_forward(x, params)

    assert gfeat.shape == (B, C3), gfeat.shape
    assert trans.shape == (B, K, K), trans.shape
    assert trans_feat is None
    assert jnp.allclose(trans, trans_ref, atol=2e-3, rtol=2e-3), "trans mismatch vs reference"
    assert jnp.allclose(gfeat, gfeat_ref, atol=2e-3, rtol=2e-3), "global feature mismatch vs reference"

    print("KERNEL_OK")
</pallas_src>

<mosaic_0001>
module attributes {stable_mosaic.version = 11 : i64} {
  func.func @pointmlp_max_kernel(%arg0: i32, %arg1: i32, %arg2: memref<1x200x2xf32, #tpu.memory_space<vmem>>, %arg3: memref<2x64xf32, #tpu.memory_space<vmem>>, %arg4: memref<1x64xf32, #tpu.memory_space<vmem>>, %arg5: memref<64x128xf32, #tpu.memory_space<vmem>>, %arg6: memref<1x128xf32, #tpu.memory_space<vmem>>, %arg7: memref<128x1024xf32, #tpu.memory_space<vmem>>, %arg8: memref<1x1024xf32, #tpu.memory_space<vmem>>, %arg9: memref<1x1x1024xf32, #tpu.memory_space<vmem>>) attributes {dimension_semantics = [#tpu.dimension_semantics<parallel>, #tpu.dimension_semantics<arbitrary>], iteration_bounds = array<i64: 2, 1>, scalar_prefetch = 0 : i64, scratch_operands = 0 : i64, tpu.core_type = #tpu.core_type<tc>, window_params = [{transform_indices = @transform_0, window_bounds = array<i64: 1, 200, 2>}, {pipeline_mode = #tpu.pipeline_mode<synchronous>, transform_indices = @transform_1, window_bounds = array<i64: 2, 64>}, {pipeline_mode = #tpu.pipeline_mode<synchronous>, transform_indices = @transform_2, window_bounds = array<i64: 1, 64>}, {pipeline_mode = #tpu.pipeline_mode<synchronous>, transform_indices = @transform_3, window_bounds = array<i64: 64, 128>}, {pipeline_mode = #tpu.pipeline_mode<synchronous>, transform_indices = @transform_4, window_bounds = array<i64: 1, 128>}, {pipeline_mode = #tpu.pipeline_mode<synchronous>, transform_indices = @transform_5, window_bounds = array<i64: 128, 1024>}, {pipeline_mode = #tpu.pipeline_mode<synchronous>, transform_indices = @transform_6, window_bounds = array<i64: 1, 1024>}, {transform_indices = @transform_7, window_bounds = array<i64: 1, 1, 1024>}]} {
    %c0 = arith.constant 0 : index
    %c0_0 = arith.constant 0 : index
    %c0_1 = arith.constant 0 : index
    %0 = vector.load %arg2[%c0, %c0_0, %c0_1] : memref<1x200x2xf32, #tpu.memory_space<vmem>>, vector<1x200x2xf32>
    %1 = vector.shape_cast %0 : vector<1x200x2xf32> to vector<200x2xf32>
    %c0_2 = arith.constant 0 : index
    %c0_3 = arith.constant 0 : index
    %2 = vector.load %arg3[%c0_2, %c0_3] : memref<2x64xf32, #tpu.memory_space<vmem>>, vector<2x64xf32>
    %cst = arith.constant dense<0.000000e+00> : vector<200x64xf32>
    %3 = tpu.matmul %1, %2, %cst {dimension_numbers = #tpu.dot_dimension_numbers<[1], [0], [0], [1], [0, 0, 1, 1], [], []>} : vector<200x2xf32>, vector<2x64xf32>, vector<200x64xf32> -> vector<200x64xf32>
    %c0_4 = arith.constant 0 : index
    %c0_5 = arith.constant 0 : index
    %4 = vector.load %arg4[%c0_4, %c0_5] : memref<1x64xf32, #tpu.memory_space<vmem>>, vector<1x64xf32>
    %5 = vector.broadcast %4 : vector<1x64xf32> to vector<200x64xf32>
    %6 = arith.addf %3, %5 : vector<200x64xf32>
    %7 = math.tanh %6 : vector<200x64xf32>
    %c0_6 = arith.constant 0 : index
    %c0_7 = arith.constant 0 : index
    %8 = vector.load %arg5[%c0_6, %c0_7] : memref<64x128xf32, #tpu.memory_space<vmem>>, vector<64x128xf32>
    %cst_8 = arith.constant dense<0.000000e+00> : vector<200x128xf32>
    %9 = tpu.matmul %7, %8, %cst_8 {dimension_numbers = #tpu.dot_dimension_numbers<[1], [0], [0], [1], [0, 0, 1, 1], [], []>} : vector<200x64xf32>, vector<64x128xf32>, vector<200x128xf32> -> vector<200x128xf32>
    %c0_9 = arith.constant 0 : index
    %c0_10 = arith.constant 0 : index
    %10 = vector.load %arg6[%c0_9, %c0_10] : memref<1x128xf32, #tpu.memory_space<vmem>>, vector<1x128xf32>
    %11 = vector.broadcast %10 : vector<1x128xf32> to vector<200x128xf32>
    %12 = arith.addf %9, %11 : vector<200x128xf32>
    %13 = math.tanh %12 : vector<200x128xf32>
    %c0_11 = arith.constant 0 : index
    %c0_12 = arith.constant 0 : index
    %14 = vector.load %arg7[%c0_11, %c0_12] : memref<128x1024xf32, #tpu.memory_space<vmem>>, vector<128x1024xf32>
    %cst_13 = arith.constant dense<0.000000e+00> : vector<200x1024xf32>
    %15 = tpu.matmul %13, %14, %cst_13 {dimension_numbers = #tpu.dot_dimension_numbers<[1], [0], [0], [1], [0, 0, 1, 1], [], []>} : vector<200x128xf32>, vector<128x1024xf32>, vector<200x1024xf32> -> vector<200x1024xf32>
    %c0_14 = arith.constant 0 : index
    %c0_15 = arith.constant 0 : index
    %16 = vector.load %arg8[%c0_14, %c0_15] : memref<1x1024xf32, #tpu.memory_space<vmem>>, vector<1x1024xf32>
    %17 = vector.broadcast %16 : vector<1x1024xf32> to vector<200x1024xf32>
    %18 = arith.addf %15, %17 : vector<200x1024xf32>
    %19 = math.tanh %18 : vector<200x1024xf32>
    %cst_16 = arith.constant dense<0xFF800000> : vector<1024xf32>
    %20 = vector.multi_reduction <maximumf>, %19, %cst_16 [0] : vector<200x1024xf32> to vector<1024xf32>
    %21 = vector.shape_cast %20 : vector<1024xf32> to vector<1x1024xf32>
    %c0_i32 = arith.constant 0 : i32
    %22 = arith.cmpi eq, %arg1, %c0_i32 : i32
    %23 = arith.extui %22 : i1 to i32
    %c0_i32_17 = arith.constant 0 : i32
    %24 = arith.cmpi ne, %23, %c0_i32_17 : i32
    scf.if %24 {
      %c0_20 = arith.constant 0 : index
      %c0_21 = arith.constant 0 : index
      %c0_22 = arith.constant 0 : index
      %28 = vector.load %arg9[%c0_20, %c0_21, %c0_22] : memref<1x1x1024xf32, #tpu.memory_space<vmem>>, vector<1x1x1024xf32>
      %29 = vector.shape_cast %28 : vector<1x1x1024xf32> to vector<1x1024xf32>
      %30 = vector.shape_cast %21 : vector<1x1024xf32> to vector<1x1x1024xf32>
      tpu.vector_store %arg9[%c0_20, %c0_21, %c0_22], %30 {strides = array<i32>} : memref<1x1x1024xf32, #tpu.memory_space<vmem>>, vector<1x1x1024xf32>,
    } else {
    }
    %c0_i32_18 = arith.constant 0 : i32
    %25 = arith.cmpi sgt, %arg1, %c0_i32_18 : i32
    %26 = arith.extui %25 : i1 to i32
    %c0_i32_19 = arith.constant 0 : i32
    %27 = arith.cmpi ne, %26, %c0_i32_19 : i32
    scf.if %27 {
      %c0_20 = arith.constant 0 : index
      %c0_21 = arith.constant 0 : index
      %c0_22 = arith.constant 0 : index
      %28 = vector.load %arg9[%c0_20, %c0_21, %c0_22] : memref<1x1x1024xf32, #tpu.memory_space<vmem>>, vector<1x1x1024xf32>
      %29 = vector.shape_cast %28 : vector<1x1x1024xf32> to vector<1x1024xf32>
      %30 = arith.maximumf %29, %21 : vector<1x1024xf32>
      %c0_23 = arith.constant 0 : index
      %c0_24 = arith.constant 0 : index
      %c0_25 = arith.constant 0 : index
      %31 = vector.load %arg9[%c0_23, %c0_24, %c0_25] : memref<1x1x1024xf32, #tpu.memory_space<vmem>>, vector<1x1x1024xf32>
      %32 = vector.shape_cast %31 : vector<1x1x1024xf32> to vector<1x1024xf32>
      %33 = vector.shape_cast %30 : vector<1x1024xf32> to vector<1x1x1024xf32>
      tpu.vector_store %arg9[%c0_23, %c0_24, %c0_25], %33 {strides = array<i32>} : memref<1x1x1024xf32, #tpu.memory_space<vmem>>, vector<1x1x1024xf32>,
    } else {
    }
    return
  }
  func.func @transform_0(%arg0: i32, %arg1: i32) -> (i32, i32, i32) {
    %c0_i32 = arith.constant 0 : i32
    %c0_i32_0 = arith.constant 0 : i32
    return %arg0, %arg1, %c0_i32 : i32, i32, i32
  }
  func.func @transform_1(%arg0: i32, %arg1: i32) -> (i32, i32) {
    %c0_i32 = arith.constant 0 : i32
    %c0_i32_0 = arith.constant 0 : i32
    %c0_i32_1 = arith.constant 0 : i32
    return %c0_i32, %c0_i32_0 : i32, i32
  }
  func.func @transform_2(%arg0: i32, %arg1: i32) -> (i32, i32) {
    %c0_i32 = arith.constant 0 : i32
    %c0_i32_0 = arith.constant 0 : i32
    %c0_i32_1 = arith.constant 0 : i32
    return %c0_i32, %c0_i32_0 : i32, i32
  }
  func.func @transform_3(%arg0: i32, %arg1: i32) -> (i32, i32) {
    %c0_i32 = arith.constant 0 : i32
    %c0_i32_0 = arith.constant 0 : i32
    %c0_i32_1 = arith.constant 0 : i32
    return %c0_i32, %c0_i32_0 : i32, i32
  }
  func.func @transform_4(%arg0: i32, %arg1: i32) -> (i32, i32) {
    %c0_i32 = arith.constant 0 : i32
    %c0_i32_0 = arith.constant 0 : i32
    %c0_i32_1 = arith.constant 0 : i32
    return %c0_i32, %c0_i32_0 : i32, i32
  }
  func.func @transform_5(%arg0: i32, %arg1: i32) -> (i32, i32) {
    %c0_i32 = arith.constant 0 : i32
    %c0_i32_0 = arith.constant 0 : i32
    %c0_i32_1 = arith.constant 0 : i32
    return %c0_i32, %c0_i32_0 : i32, i32
  }
  func.func @transform_6(%arg0: i32, %arg1: i32) -> (i32, i32) {
    %c0_i32 = arith.constant 0 : i32
    %c0_i32_0 = arith.constant 0 : i32
    %c0_i32_1 = arith.constant 0 : i32
    return %c0_i32, %c0_i32_0 : i32, i32
  }
  func.func @transform_7(%arg0: i32, %arg1: i32) -> (i32, i32, i32) {
    %c0_i32 = arith.constant 0 : i32
    %c0_i32_0 = arith.constant 0 : i32
    %c0_i32_1 = arith.constant 0 : i32
    return %arg0, %c0_i32, %c0_i32_0 : i32, i32, i32
  }
}

</mosaic_0001>

<llo_original>
// kernel: tpu_custom_call.1
$region0: #{tpu_custom_call.1}
  #allocation0 [shape = 'u32[]', space=smem, size = 0x4, offset = 0x4, fixed_abs, tag = 'smem constant byte address 0x4 - core index']
  #allocation1 [shape = 'u32[144,128]{1,0:T(1,128)}', space=vmem, size = 0x12000, scoped, tag = 'internal scratch']
  %s0 = inlined_call_operand.vmem [shape: f32[2,200,2], index: 0, kind: input, shape index: {}]
  %s1 = inlined_call_operand.vmem [shape: f32[2,64], index: 1, kind: input, shape index: {}]
  %s2 = inlined_call_operand.vmem [shape: f32[1,64], index: 2, kind: input, shape index: {}]
  %s3 = inlined_call_operand.vmem [shape: f32[64,128], index: 3, kind: input, shape index: {}]
  %s4 = inlined_call_operand.vmem [shape: f32[1,128], index: 4, kind: input, shape index: {}]
  %s5 = inlined_call_operand.hbm [shape: f32[128,1024], index: 5, kind: input, shape index: {}]
  %s6 = inlined_call_operand.vmem [shape: f32[1,1024], index: 6, kind: input, shape index: {}]
  %s7 = inlined_call_operand.hbm [shape: f32[2,1,1024], index: 7, kind: output, shape index: {}]
  %s8 = sld [smem:[#allocation0]]
  $region73: #{tpu_custom_call.1} parent=0
    _
  %s10 = ssub.s32 1, %s8
  %s11 = scalar_select 0, %s10, %s8
  $region1: #{tpu_custom_call.1} parent=0
    #allocation2 [shape = 'u8[524288]{0}', space=vmem, size = 0x80000, scoped, tag = 'input window, operand 5, single buffered']
    #allocation3 [shape = 's32[2]{0}', space=sflag, size = 0x8, scoped, tag = 'scoped memory for tpu_custom_call.1']
    #allocation4 [shape = 's32[2]{0}', space=sflag, size = 0x8, scoped, tag = 'scoped memory for tpu_custom_call.1']
    #allocation5 [shape = 'u8[8192]{0}', space=vmem, size = 0x2000, scoped, tag = 'output window, operand 0']
    %12 = vsyncpa [#allocation3], 0
    %13 = vsyncpa [#allocation4], 0
    %s14 = scalar_lea.sflag [#allocation4], 1
    %15 = vsyncpa %s14, 0
    loop: start=0, step=1, limit=4
    $region2: #{tpu_custom_call.1} parent=1 // loop_pre_header
      _
    $region3: #{tpu_custom_call.1} parent=1 // loop_header
      %s17 = sphi 0, %s21
      %p18 = scmp.ge.s32.totalorder %s17, 4
      %s24 = sphi 0, %s36
      %s25 = sphi 0, %s32
      %s26 = sphi 0, %s24
      %s27 = sphi 0, %s25
      %s28 = sphi 0, %s26
      %s29 = sphi 0, %s27
      %s41 = sphi 0, %s43
      %s44 = sphi 0, %s41
      %s45 = sphi 0, %s44
      %s61 = sphi 0, %s45
      %s65 = sphi 0, %s65
      %s67 = sphi 0, %s65
      %s68 = sphi 0, %s67
      %s82 = sphi 0, %s68
      %s86 = sphi 0, %s86
      %s88 = sphi 0, %s86
      %s89 = sphi 0, %s88
      %s103 = sphi 0, %s89
      %s107 = sphi 0, %s107
      %s109 = sphi 0, %s107
      %s110 = sphi 0, %s109
      %s124 = sphi 0, %s110
      %s128 = sphi 0, %s128
      %s130 = sphi 0, %s128
      %s131 = sphi 0, %s130
      %s145 = sphi 0, %s131
      %s149 = sphi 0, %s149
      %s151 = sphi 0, %s149
      %s152 = sphi 0, %s151
      %s166 = sphi 0, %s152
      %s170 = sphi 0, %s170
      %s172 = sphi 0, %s170
      %s173 = sphi 0, %s172
      %s187 = sphi 0, %s173
      %s193 = sphi 0, %s195
      %s196 = sphi 0, %s193
      %s197 = sphi 0, %s196
      %s213 = sphi 0, %s197
    $region4: #{tpu_custom_call.1} parent=1 // loop_header_branch
      %20 = sbr.rel (%p18) target = $region8
    $region5: #{tpu_custom_call.1} parent=1 // loop_body
      %s22 = ssub.s32 %s17, 1
      %s23 = ssub.s32 %s17, 2
      %s30 = sadd.s32 1, %s25
      %p31 = scmp.ge.s32.totalorder %s30, 1
      %s32 = scalar_select %p31, 0, %s30
      %s33 = sadd.s32 1, %s24
      %s34 = scalar_select %p31, %s33, %s24
      %p35 = scmp.ge.s32.totalorder %s34, 2
      %s36 = scalar_select %p35, 0, %s34
      %s37 = ssub.s32 %s24, %s36
      %s38 = ssub.s32 %s25, %s32
      %s39 = sor.u32 %s37, %s38
      %p40 = scmp.eq.s32.totalorder %s39, 0
      %s42 = sadd.s32 %s41, 1
      %s43 = scalar_select %p40, %s41, %s42
      %p46 = pneg %p40
      %p47 = scmp.eq.s32.totalorder %s17, 1
      %p48 = por %p46, %p47
      %p49 = scmp.ne.s32.totalorder %s41, %s44
      %p50 = scmp.eq.s32.totalorder %s17, 0
      %p51 = por %p49, %p50
      %p52 = scmp.ne.s32.totalorder %s41, %s44
      %p53 = scmp.eq.s32.totalorder %s22, 1
      %p54 = por %p52, %p53
      %p55 = scmp.ne.s32.totalorder %s44, %s45
      %p56 = scmp.eq.s32.totalorder %s22, 0
      %p57 = por %p55, %p56
      %p58 = scmp.ne.s32.totalorder %s44, %s45
      %p59 = scmp.eq.s32.totalorder %s23, 1
      %p60 = por %p58, %p59
      %p62 = scmp.ne.s32.totalorder %s45, %s61
      %p63 = scmp.eq.s32.totalorder %s23, 0
      %p64 = por %p62, %p63
      %s66 = sadd.s32 %s65, 1
      %p69 = scmp.eq.s32.totalorder %s17, 1
      %p70 = scmp.ne.s32.totalorder %s65, %s67
      %p71 = scmp.eq.s32.totalorder %s17, 0
      %p72 = por %p70, %p71
      %p73 = scmp.ne.s32.totalorder %s65, %s67
      %p74 = scmp.eq.s32.totalorder %s22, 1
      %p75 = por %p73, %p74
      %p76 = scmp.ne.s32.totalorder %s67, %s68
      %p77 = scmp.eq.s32.totalorder %s22, 0
      %p78 = por %p76, %p77
      %p79 = scmp.ne.s32.totalorder %s67, %s68
      %p80 = scmp.eq.s32.totalorder %s23, 1
      %p81 = por %p79, %p80
      %p83 = scmp.ne.s32.totalorder %s68, %s82
      %p84 = scmp.eq.s32.totalorder %s23, 0
      %p85 = por %p83, %p84
      %s87 = sadd.s32 %s86, 1
      %p90 = scmp.eq.s32.totalorder %s17, 1
      %p91 = scmp.ne.s32.totalorder %s86, %s88
      %p92 = scmp.eq.s32.totalorder %s17, 0
      %p93 = por %p91, %p92
      %p94 = scmp.ne.s32.totalorder %s86, %s88
      %p95 = scmp.eq.s32.totalorder %s22, 1
      %p96 = por %p94, %p95
      %p97 = scmp.ne.s32.totalorder %s88, %s89
      %p98 = scmp.eq.s32.totalorder %s22, 0
      %p99 = por %p97, %p98
      %p100 = scmp.ne.s32.totalorder %s88, %s89
      %p101 = scmp.eq.s32.totalorder %s23, 1
      %p102 = por %p100, %p101
      %p104 = scmp.ne.s32.totalorder %s89, %s103
      %p105 = scmp.eq.s32.totalorder %s23, 0
      %p106 = por %p104, %p105
      %s108 = sadd.s32 %s107, 1
      %p111 = scmp.eq.s32.totalorder %s17, 1
      %p112 = scmp.ne.s32.totalorder %s107, %s109
      %p113 = scmp.eq.s32.totalorder %s17, 0
      %p114 = por %p112, %p113
      %p115 = scmp.ne.s32.totalorder %s107, %s109
      %p116 = scmp.eq.s32.totalorder %s22, 1
      %p117 = por %p115, %p116
      %p118 = scmp.ne.s32.totalorder %s109, %s110
      %p119 = scmp.eq.s32.totalorder %s22, 0
      %p120 = por %p118, %p119
      %p121 = scmp.ne.s32.totalorder %s109, %s110
      %p122 = scmp.eq.s32.totalorder %s23, 1
      %p123 = por %p121, %p122
      %p125 = scmp.ne.s32.totalorder %s110, %s124
      %p126 = scmp.eq.s32.totalorder %s23, 0
      %p127 = por %p125, %p126
      %s129 = sadd.s32 %s128, 1
      %p132 = scmp.eq.s32.totalorder %s17, 1
      %p133 = scmp.ne.s32.totalorder %s128, %s130
      %p134 = scmp.eq.s32.totalorder %s17, 0
      %p135 = por %p133, %p134
      %p136 = scmp.ne.s32.totalorder %s128, %s130
      %p137 = scmp.eq.s32.totalorder %s22, 1
      %p138 = por %p136, %p137
      %p139 = scmp.ne.s32.totalorder %s130, %s131
      %p140 = scmp.eq.s32.totalorder %s22, 0
      %p141 = por %p139, %p140
      %p142 = scmp.ne.s32.totalorder %s130, %s131
      %p143 = scmp.eq.s32.totalorder %s23, 1
      %p144 = por %p142, %p143
      %p146 = scmp.ne.s32.totalorder %s131, %s145
      %p147 = scmp.eq.s32.totalorder %s23, 0
      %p148 = por %p146, %p147
      %s150 = sadd.s32 %s149, 1
      %p153 = scmp.eq.s32.totalorder %s17, 1
      %p154 = scmp.ne.s32.totalorder %s149, %s151
      %p155 = scmp.eq.s32.totalorder %s17, 0
      %p156 = por %p154, %p155
      %p157 = scmp.ne.s32.totalorder %s149, %s151
      %p158 = scmp.eq.s32.totalorder %s22, 1
      %p159 = por %p157, %p158
      %p160 = scmp.ne.s32.totalorder %s151, %s152
      %p161 = scmp.eq.s32.totalorder %s22, 0
      %p162 = por %p160, %p161
      %p163 = scmp.ne.s32.totalorder %s151, %s152
      %p164 = scmp.eq.s32.totalorder %s23, 1
      %p165 = por %p163, %p164
      %p167 = scmp.ne.s32.totalorder %s152, %s166
      %p168 = scmp.eq.s32.totalorder %s23, 0
      %p169 = por %p167, %p168
      %s171 = sadd.s32 %s170, 1
      %p174 = scmp.eq.s32.totalorder %s17, 1
      %p175 = scmp.ne.s32.totalorder %s170, %s172
      %p176 = scmp.eq.s32.totalorder %s17, 0
      %p177 = por %p175, %p176
      %p178 = scmp.ne.s32.totalorder %s170, %s172
      %p179 = scmp.eq.s32.totalorder %s22, 1
      %p180 = por %p178, %p179
      %p181 = scmp.ne.s32.totalorder %s172, %s173
      %p182 = scmp.eq.s32.totalorder %s22, 0
      %p183 = por %p181, %p182
      %p184 = scmp.ne.s32.totalorder %s172, %s173
      %p185 = scmp.eq.s32.totalorder %s23, 1
      %p186 = por %p184, %p185
      %p188 = scmp.ne.s32.totalorder %s173, %s187
      %p189 = scmp.eq.s32.totalorder %s23, 0
      %p190 = por %p188, %p189
      %s191 = ssub.s32 %s24, %s36
      %p192 = scmp.eq.s32.totalorder %s191, 0
      %s194 = sadd.s32 %s193, 1
      %s195 = scalar_select %p192, %s193, %s194
      %p198 = pneg %p192
      %p199 = scmp.eq.s32.totalorder %s17, 1
      %p200 = por %p198, %p199
      %p201 = scmp.ne.s32.totalorder %s193, %s196
      %p202 = scmp.eq.s32.totalorder %s17, 0
      %p203 = por %p201, %p202
      %p204 = scmp.ne.s32.totalorder %s193, %s196
      %p205 = scmp.eq.s32.totalorder %s22, 1
      %p206 = por %p204, %p205
      %p207 = scmp.ne.s32.totalorder %s196, %s197
      %p208 = scmp.eq.s32.totalorder %s22, 0
      %p209 = por %p207, %p208
      %p210 = scmp.ne.s32.totalorder %s196, %s197
      %p211 = scmp.eq.s32.totalorder %s23, 1
      %p212 = por %p210, %p211
      %p214 = scmp.ne.s32.totalorder %s197, %s213
      %p215 = scmp.eq.s32.totalorder %s23, 0
      %p216 = por %p214, %p215
      %p217 = scmp.le.s32.totalorder 1, %s17
      %p218 = scmp.lt.s32.totalorder %s17, 3
      %p219 = pnand %p217, %p218
      %p220 = pneg %p219
      // Predicated region
      $region9: #{tpu_custom_call.1} parent=5 // pred_check
        _
      $region10: #{tpu_custom_call.1} parent=5 // pred_check_branch
        %222 = sbr.rel (%p219) target = $region12
      $region11: #{tpu_custom_call.1} parent=5 // pred_region
        %s223 = ssub.s32 %s17, 1
        // Predicated region
        $region13: #{tpu_custom_call.1} parent=11 // pred_check
          %p224 = pneg %p78
        $region14: #{tpu_custom_call.1} parent=11 // pred_check_branch
          %226 = sbr.rel (%p224) target = $region16
        $region15: #{tpu_custom_call.1} parent=11 // pred_region
          _
        $region16: #{tpu_custom_call.1} parent=11 // pred_fallthru
          _
        // Predicated region
        $region17: #{tpu_custom_call.1} parent=11 // pred_check
          %p227 = pneg %p99
        $region18: #{tpu_custom_call.1} parent=11 // pred_check_branch
          %229 = sbr.rel (%p227) target = $region20
        $region19: #{tpu_custom_call.1} parent=11 // pred_region
          _
        $region20: #{tpu_custom_call.1} parent=11 // pred_fallthru
          _
        // Predicated region
        $region21: #{tpu_custom_call.1} parent=11 // pred_check
          %p230 = pneg %p120
        $region22: #{tpu_custom_call.1} parent=11 // pred_check_branch
          %232 = sbr.rel (%p230) target = $region24
        $region23: #{tpu_custom_call.1} parent=11 // pred_region
          _
        $region24: #{tpu_custom_call.1} parent=11 // pred_fallthru
          _
        // Predicated region
        $region25: #{tpu_custom_call.1} parent=11 // pred_check
          %p233 = pneg %p141
        $region26: #{tpu_custom_call.1} parent=11 // pred_check_branch
          %235 = sbr.rel (%p233) target = $region28
        $region27: #{tpu_custom_call.1} parent=11 // pred_region
          _
        $region28: #{tpu_custom_call.1} parent=11 // pred_fallthru
          _
        // Predicated region
        $region29: #{tpu_custom_call.1} parent=11 // pred_check
          %p236 = pneg %p162
        $region30: #{tpu_custom_call.1} parent=11 // pred_check_branch
          %238 = sbr.rel (%p236) target = $region32
        $region31: #{tpu_custom_call.1} parent=11 // pred_region
          %s240 = ssub.s32 16384, 16384
          %241 = vsyncadd [#allocation3], %s240
          %s242 = sshll.u32 [#allocation2], 4
          %s243 = int_to_ptr.vmem [resolvable:$true] %s242
          %248 = dma.hbm_to_vmem [thread:$0]  %s5, 16384, %s243, [#allocation3], 1024, 1024, 64
        $region32: #{tpu_custom_call.1} parent=11 // pred_fallthru
          _
        // Predicated region
        $region33: #{tpu_custom_call.1} parent=11 // pred_check
          %p249 = pneg %p183
        $region34: #{tpu_custom_call.1} parent=11 // pred_check_branch
          %251 = sbr.rel (%p249) target = $region36
        $region35: #{tpu_custom_call.1} parent=11 // pred_region
          _
        $region36: #{tpu_custom_call.1} parent=11 // pred_fallthru
          _
      $region12: #{tpu_custom_call.1} parent=5 // pred_fallthru
        _
      %p252 = scmp.lt.s32.totalorder %s17, 2
      // Predicated region
      $region37: #{tpu_custom_call.1} parent=5 // pred_check
        %p253 = pneg %p252
      $region38: #{tpu_custom_call.1} parent=5 // pred_check_branch
        %255 = sbr.rel (%p253) target = $region40
      $region39: #{tpu_custom_call.1} parent=5 // pred_region
        // Predicated region
        $region41: #{tpu_custom_call.1} parent=39 // pred_check
          %p256 = pneg %p51
        $region42: #{tpu_custom_call.1} parent=39 // pred_check_branch
          %258 = sbr.rel (%p256) target = $region44
        $region43: #{tpu_custom_call.1} parent=39 // pred_region
          %s259 = smul.u32 25, %s25
          %p260 = scmp.lt.s32.totalorder %s24, 1
          %s261 = scalar_select %p260, %s24, 1
          %p262 = scmp.lt.s32.totalorder %s259, 24
          %s263 = scalar_select %p262, %s259, 24
          %s264 = smul.addr %s261, 25
          %s265 = sadd.s32 %s263, %s264
          %s266 = smul.addr %s265, 8
          %s267 = scalar_lea.vmem %s0, %s266
          %s268 = smul.u32 25, %s25
        $region44: #{tpu_custom_call.1} parent=39 // pred_fallthru
          _
      $region40: #{tpu_custom_call.1} parent=5 // pred_fallthru
        _
      %p269 = scmp.le.s32.totalorder 1, %s17
      %p270 = scmp.lt.s32.totalorder %s17, 3
      %p271 = pnand %p269, %p270
      %p272 = pneg %p271
      // Predicated region
      $region45: #{tpu_custom_call.1} parent=5 // pred_check
        _
      $region46: #{tpu_custom_call.1} parent=5 // pred_check_branch
        %274 = sbr.rel (%p271) target = $region48
      $region47: #{tpu_custom_call.1} parent=5 // pred_region
        %s275 = ssub.s32 %s17, 1
        // Predicated region
        $region49: #{tpu_custom_call.1} parent=47 // pred_check
          %p276 = pneg %p162
        $region50: #{tpu_custom_call.1} parent=47 // pred_check_branch
          %278 = sbr.rel (%p276) target = $region52
        $region51: #{tpu_custom_call.1} parent=47 // pred_region
          %279 = dma.done [#allocation3], 16384
        $region52: #{tpu_custom_call.1} parent=47 // pred_fallthru
          _
        %s280 = smul.u32 25, %s27
        %p281 = scmp.lt.s32.totalorder %s26, 1
        %s282 = scalar_select %p281, %s26, 1
        %p283 = scmp.lt.s32.totalorder %s280, 24
        %s284 = scalar_select %p283, %s280, 24
        %s285 = smul.addr %s282, 25
        %s286 = sadd.s32 %s284, %s285
        %s287 = smul.addr %s286, 8
        %s288 = scalar_lea.vmem %s0, %s287
        %p289 = pneg %p57
        %p290 = pneg %p54
        %p291 = pneg %p78
        %p292 = pneg %p75
        %p293 = pneg %p99
        %p294 = pneg %p96
        %p295 = pneg %p120
        %p296 = pneg %p117
        %p297 = pneg %p141
        %p298 = pneg %p138
        %p299 = pneg %p162
        %p300 = pneg %p159
        %p301 = pneg %p183
        %p302 = pneg %p180
        %p303 = pneg %p209
        %p304 = pneg %p206
        %s305 = sand.u32 %s196, 1
        %s306 = scalar_lea.sflag [#allocation4], %s305
        %s307 = sand.u32 %s196, 1
        %s308 = smul.addr %s307, 8
        %s309 = scalar_lea.vmem [#allocation5], %s308
        %s310 = smul.u32 25, %s27
        %p311 = scmp.lt.s32.totalorder %s26, 1
        %s312 = scalar_select %p311, %s26, 1
        %p313 = scmp.lt.s32.totalorder %s310, 24
        %s314 = scalar_select %p313, %s310, 24
        %s315 = smul.addr %s312, 25
        %s316 = sadd.s32 %s314, %s315
        %s317 = smul.addr %s316, 8
        %s318 = scalar_lea.vmem %s0, %s317
        %s319 = smul.u32 25, %s27
        %v320 = vld [vmem:[%s318] sm:$0xff]
        %v321 = vld [vmem:[%s318 + $0x8] sm:$0xff]
        %v322 = vld [vmem:[%s318 + $0x10] sm:$0xff]
        %v323 = vld [vmem:[%s318 + $0x18] sm:$0xff]
        %v324 = vld [vmem:[%s318 + $0x20] sm:$0xff]
        %v325 = vld [vmem:[%s318 + $0x28] sm:$0xff]
        %v326 = vld [vmem:[%s318 + $0x30] sm:$0xff]
        %v327 = vld [vmem:[%s318 + $0x38] sm:$0xff]
        %v328 = vld [vmem:[%s318 + $0x40] sm:$0xff]
        %v329 = vld [vmem:[%s318 + $0x48] sm:$0xff]
        %v330 = vld [vmem:[%s318 + $0x50] sm:$0xff]
        %v331 = vld [vmem:[%s318 + $0x58] sm:$0xff]
        %v332 = vld [vmem:[%s318 + $0x60] sm:$0xff]
        %v333 = vld [vmem:[%s318 + $0x68] sm:$0xff]
        %v334 = vld [vmem:[%s318 + $0x70] sm:$0xff]
        %v335 = vld [vmem:[%s318 + $0x78] sm:$0xff]
        %v336 = vld [vmem:[%s318 + $0x80] sm:$0xff]
        %v337 = vld [vmem:[%s318 + $0x88] sm:$0xff]
        %v338 = vld [vmem:[%s318 + $0x90] sm:$0xff]
        %v339 = vld [vmem:[%s318 + $0x98] sm:$0xff]
        %v340 = vld [vmem:[%s318 + $0xa0] sm:$0xff]
        %v341 = vld [vmem:[%s318 + $0xa8] sm:$0xff]
        %v342 = vld [vmem:[%s318 + $0xb0] sm:$0xff]
        %v343 = vld [vmem:[%s318 + $0xb8] sm:$0xff]
        %v344 = vld [vmem:[%s318 + $0xc0] sm:$0xff]
        %v345 = vld [vmem:[%s1] sm:$0x3]
        %v346 = vld [vmem:[%s2] sm:$0x1]
        %v348 = vlaneseq
        %v349 = vshrl.u32 %v348, 7
        %v350 = vsub.s32 0, %v349
        %v351 = vrot.slane %v346, %v350
        %vm353 = vcmask 15360
        %v355 = vsel %vm353, %v320, 0
        %v358 = vsel %vm353, %v321, 0
        %v361 = vsel %vm353, %v322, 0
        %v364 = vsel %vm353, %v323, 0
        %v367 = vsel %vm353, %v324, 0
        %v370 = vsel %vm353, %v325, 0
        %v373 = vsel %vm353, %v326, 0
        %v376 = vsel %vm353, %v327, 0
        %v379 = vsel %vm353, %v328, 0
        %v382 = vsel %vm353, %v329, 0
        %v385 = vsel %vm353, %v330, 0
        %v388 = vsel %vm353, %v331, 0
        %v391 = vsel %vm353, %v332, 0
        %v394 = vsel %vm353, %v333, 0
        %v397 = vsel %vm353, %v334, 0
        %v400 = vsel %vm353, %v335, 0
        %v403 = vsel %vm353, %v336, 0
        %v406 = vsel %vm353, %v337, 0
        %v409 = vsel %vm353, %v338, 0
        %v412 = vsel %vm353, %v339, 0
        %v415 = vsel %vm353, %v340, 0
        %v418 = vsel %vm353, %v341, 0
        %v421 = vsel %vm353, %v342, 0
        %v424 = vsel %vm353, %v343, 0
        %v427 = vsel %vm353, %v344, 0
        %vm429 = vcmask 1041408
        %v431 = vsel %vm429, %v345, 0
        %433 = vmatprep.subr.mxu0 0.0
        %434 = vmatpush1.msra.mxu0 %v431
        %435 = vmatprep.subr.mxu0 0.0
        %436 = vmatpush1.msra.mxu0 0.0
        %437 = vmatprep.subr.mxu0 0.0
        %438 = vmatpush1.msra.mxu0 0.0
        %439 = vmatprep.subr.mxu0 0.0
        %440 = vmatpush1.msra.mxu0 0.0
        %441 = vmatprep.subr.mxu0 0.0
        %442 = vmatpush1.msra.mxu0 0.0
        %443 = vmatprep.subr.mxu0 0.0
        %444 = vmatpush1.msra.mxu0 0.0
        %445 = vmatprep.subr.mxu0 0.0
        %446 = vmatpush1.msra.mxu0 0.0
        %447 = vmatprep.subr.mxu0 0.0
        %448 = vmatpush1.msra.mxu0 0.0
        %449 = vmatprep.subr.mxu0 0.0
        %450 = vmatpush1.msra.mxu0 0.0
        %451 = vmatprep.subr.mxu0 0.0
        %452 = vmatpush1.msra.mxu0 0.0
        %453 = vmatprep.subr.mxu0 0.0
        %454 = vmatpush1.msra.mxu0 0.0
        %455 = vmatprep.subr.mxu0 0.0
        %456 = vmatpush1.msra.mxu0 0.0
        %457 = vmatprep.subr.mxu0 0.0
        %458 = vmatpush1.msra.mxu0 0.0
        %459 = vmatprep.subr.mxu0 0.0
        %460 = vmatpush1.msra.mxu0 0.0
        %461 = vmatprep.subr.mxu0 0.0
        %462 = vmatpush1.msra.mxu0 0.0
        %463 = vmatprep.subr.mxu0 0.0
        %464 = vmatpush1.msra.mxu0 0.0
        %465 = vmatprep.subr.mxu0 0.0
        %466 = vmatpush1.msra.mxu0 0.0
        %467 = vmatprep.subr.mxu0 0.0
        %468 = vmatpush1.msra.mxu0 0.0
        %469 = vmatprep.subr.mxu0 0.0
        %470 = vmatpush1.msra.mxu0 0.0
        %471 = vmatprep.subr.mxu0 0.0
        %472 = vmatpush1.msra.mxu0 0.0
        %473 = vmatprep.subr.mxu0 0.0
        %474 = vmatpush1.msra.mxu0 0.0
        %475 = vmatprep.subr.mxu0 0.0
        %476 = vmatpush1.msra.mxu0 0.0
        %477 = vmatprep.subr.mxu0 0.0
        %478 = vmatpush1.msra.mxu0 0.0
        %479 = vmatprep.subr.mxu0 0.0
        %480 = vmatpush1.msra.mxu0 0.0
        %481 = vmatprep.subr.mxu0 0.0
        %482 = vmatpush1.msra.mxu0 0.0
        %483 = vmatprep.subr.mxu0 0.0
        %484 = vmatpush1.msra.mxu0 0.0
        %485 = vmatprep.subr.mxu0 0.0
        %486 = vmatpush1.msra.mxu0 0.0
        %487 = vmatprep.subr.mxu0 0.0
        %488 = vmatpush1.msra.mxu0 0.0
        %489 = vmatprep.subr.mxu0 0.0
        %490 = vmatpush1.msra.mxu0 0.0
        %491 = vmatprep.subr.mxu0 0.0
        %492 = vmatpush1.msra.mxu0 0.0
        %493 = vmatprep.subr.mxu0 0.0
        %494 = vmatpush1.msra.mxu0 0.0
        %495 = vmatprep.subr.mxu0 0.0
        %496 = vmatpush1.msra.mxu0 0.0
        %497 = vmatprep.mubr.f32.mxu0 0.0
        %498 = vmatmul.mubr.f32.gmra.mrb[0].mxu0 %v355
        %v499 = vpop.f32.mrb[0].mxu0
        %v500 = vadd.f32 %v351, %v499
        %v501 = vpop.f32.mrb[0].mxu0
        %502 = vmatprep.mubr.f32.mxu0 0.0
        %503 = vmatmul.mubr.f32.gmra.mrb[0].mxu0 %v358
        %v504 = vpop.f32.mrb[0].mxu0
        %v505 = vadd.f32 %v351, %v504
        %v506 = vpop.f32.mrb[0].mxu0
        %507 = vmatprep.mubr.f32.mxu0 0.0
        %508 = vmatmul.mubr.f32.gmra.mrb[0].mxu0 %v361
        %v509 = vpop.f32.mrb[0].mxu0
        %v510 = vadd.f32 %v351, %v509
        %v511 = vpop.f32.mrb[0].mxu0
        %512 = vmatprep.mubr.f32.mxu0 0.0
        %513 = vmatmul.mubr.f32.gmra.mrb[0].mxu0 %v364
        %v514 = vpop.f32.mrb[0].mxu0
        %v515 = vadd.f32 %v351, %v514
        %v516 = vpop.f32.mrb[0].mxu0
        %517 = vmatprep.mubr.f32.mxu0 0.0
        %518 = vmatmul.mubr.f32.gmra.mrb[0].mxu0 %v367
        %v519 = vpop.f32.mrb[0].mxu0
        %v520 = vadd.f32 %v351, %v519
        %v521 = vpop.f32.mrb[0].mxu0
        %522 = vmatprep.mubr.f32.mxu0 0.0
        %523 = vmatmul.mubr.f32.gmra.mrb[0].mxu0 %v370
        %v524 = vpop.f32.mrb[0].mxu0
        %v525 = vadd.f32 %v351, %v524
        %v526 = vpop.f32.mrb[0].mxu0
        %527 = vmatprep.mubr.f32.mxu0 0.0
        %528 = vmatmul.mubr.f32.gmra.mrb[0].mxu0 %v373
        %v529 = vpop.f32.mrb[0].mxu0
        %v530 = vadd.f32 %v351, %v529
        %v531 = vpop.f32.mrb[0].mxu0
        %532 = vmatprep.mubr.f32.mxu0 0.0
        %533 = vmatmul.mubr.f32.gmra.mrb[0].mxu0 %v376
        %v534 = vpop.f32.mrb[0].mxu0
        %v535 = vadd.f32 %v351, %v534
        %v536 = vpop.f32.mrb[0].mxu0
        %537 = vmatprep.mubr.f32.mxu0 0.0
        %538 = vmatmul.mubr.f32.gmra.mrb[0].mxu0 %v379
        %v539 = vpop.f32.mrb[0].mxu0
        %v540 = vadd.f32 %v351, %v539
        %v541 = vpop.f32.mrb[0].mxu0
        %542 = vmatprep.mubr.f32.mxu0 0.0
        %543 = vmatmul.mubr.f32.gmra.mrb[0].mxu0 %v382
        %v544 = vpop.f32.mrb[0].mxu0
        %v545 = vadd.f32 %v351, %v544
        %v546 = vpop.f32.mrb[0].mxu0
        %547 = vmatprep.mubr.f32.mxu0 0.0
        %548 = vmatmul.mubr.f32.gmra.mrb[0].mxu0 %v385
        %v549 = vpop.f32.mrb[0].mxu0
        %v550 = vadd.f32 %v351, %v549
        %v551 = vpop.f32.mrb[0].mxu0
        %552 = vmatprep.mubr.f32.mxu0 0.0
        %553 = vmatmul.mubr.f32.gmra.mrb[0].mxu0 %v388
        %v554 = vpop.f32.mrb[0].mxu0
        %v555 = vadd.f32 %v351, %v554
        %v556 = vpop.f32.mrb[0].mxu0
        %557 = vmatprep.mubr.f32.mxu0 0.0
        %558 = vmatmul.mubr.f32.gmra.mrb[0].mxu0 %v391
        %v559 = vpop.f32.mrb[0].mxu0
        %v560 = vadd.f32 %v351, %v559
        %v561 = vpop.f32.mrb[0].mxu0
        %562 = vmatprep.mubr.f32.mxu0 0.0
        %563 = vmatmul.mubr.f32.gmra.mrb[0].mxu0 %v394
        %v564 = vpop.f32.mrb[0].mxu0
        %v565 = vadd.f32 %v351, %v564
        %v566 = vpop.f32.mrb[0].mxu0
        %567 = vmatprep.mubr.f32.mxu0 0.0
        %568 = vmatmul.mubr.f32.gmra.mrb[0].mxu0 %v397
        %v569 = vpop.f32.mrb[0].mxu0
        %v570 = vadd.f32 %v351, %v569
        %v571 = vpop.f32.mrb[0].mxu0
        %572 = vmatprep.mubr.f32.mxu0 0.0
        %573 = vmatmul.mubr.f32.gmra.mrb[0].mxu0 %v400
        %v574 = vpop.f32.mrb[0].mxu0
        %v575 = vadd.f32 %v351, %v574
        %v576 = vpop.f32.mrb[0].mxu0
        %577 = vmatprep.mubr.f32.mxu0 0.0
        %578 = vmatmul.mubr.f32.gmra.mrb[0].mxu0 %v403
        %v579 = vpop.f32.mrb[0].mxu0
        %v580 = vadd.f32 %v351, %v579
        %v581 = vpop.f32.mrb[0].mxu0
        %582 = vmatprep.mubr.f32.mxu0 0.0
        %583 = vmatmul.mubr.f32.gmra.mrb[0].mxu0 %v406
        %v584 = vpop.f32.mrb[0].mxu0
        %v585 = vadd.f32 %v351, %v584
        %v586 = vpop.f32.mrb[0].mxu0
        %587 = vmatprep.mubr.f32.mxu0 0.0
        %588 = vmatmul.mubr.f32.gmra.mrb[0].mxu0 %v409
        %v589 = vpop.f32.mrb[0].mxu0
        %v590 = vadd.f32 %v351, %v589
        %v591 = vpop.f32.mrb[0].mxu0
        %592 = vmatprep.mubr.f32.mxu0 0.0
        %593 = vmatmul.mubr.f32.gmra.mrb[0].mxu0 %v412
        %v594 = vpop.f32.mrb[0].mxu0
        %v595 = vadd.f32 %v351, %v594
        %v596 = vpop.f32.mrb[0].mxu0
        %597 = vmatprep.mubr.f32.mxu0 0.0
        %598 = vmatmul.mubr.f32.gmra.mrb[0].mxu0 %v415
        %v599 = vpop.f32.mrb[0].mxu0
        %v600 = vadd.f32 %v351, %v599
        %v601 = vpop.f32.mrb[0].mxu0
        %602 = vmatprep.mubr.f32.mxu0 0.0
        %603 = vmatmul.mubr.f32.gmra.mrb[0].mxu0 %v418
        %v604 = vpop.f32.mrb[0].mxu0
        %v605 = vadd.f32 %v351, %v604
        %v606 = vpop.f32.mrb[0].mxu0
        %607 = vmatprep.mubr.f32.mxu0 0.0
        %608 = vmatmul.mubr.f32.gmra.mrb[0].mxu0 %v421
        %v609 = vpop.f32.mrb[0].mxu0
        %v610 = vadd.f32 %v351, %v609
        %v611 = vpop.f32.mrb[0].mxu0
        %612 = vmatprep.mubr.f32.mxu0 0.0
        %613 = vmatmul.mubr.f32.gmra.mrb[0].mxu0 %v424
        %v614 = vpop.f32.mrb[0].mxu0
        %v615 = vadd.f32 %v351, %v614
        %v616 = vpop.f32.mrb[0].mxu0
        %617 = vmatprep.mubr.f32.mxu0 0.0
        %618 = vmatmul.mubr.f32.gmra.mrb[0].mxu0 %v427
        %v619 = vpop.f32.mrb[0].mxu0
        %v620 = vadd.f32 %v351, %v619
        %v621 = vpop.f32.mrb[0].mxu0
        %622 = vdwg.mxu0
        %v623 = vtanh.pop %v500
        %v624 = vtanh.pop %v505
        %v625 = vtanh.pop %v510
        %v626 = vtanh.pop %v515
        %v627 = vtanh.pop %v520
        %v628 = vtanh.pop %v525
        %v629 = vtanh.pop %v530
        %v630 = vtanh.pop %v535
        %v631 = vtanh.pop %v540
        %v632 = vtanh.pop %v545
        %v633 = vtanh.pop %v550
        %v634 = vtanh.pop %v555
        %v635 = vtanh.pop %v560
        %v636 = vtanh.pop %v565
        %v637 = vtanh.pop %v570
        %v638 = vtanh.pop %v575
        %v639 = vtanh.pop %v580
        %v640 = vtanh.pop %v585
        %v641 = vtanh.pop %v590
        %v642 = vtanh.pop %v595
        %v643 = vtanh.pop %v600
        %v644 = vtanh.pop %v605
        %v645 = vtanh.pop %v610
        %v646 = vtanh.pop %v615
        %v647 = vtanh.pop %v620
        %v648 = vld [vmem:[%s3] sm:$0xff]
        %v649 = vld [vmem:[%s3 + $0x8] sm:$0xff]
        %v650 = vld [vmem:[%s3 + $0x10] sm:$0xff]
        %v651 = vld [vmem:[%s3 + $0x18] sm:$0xff]
        %v652 = vld [vmem:[%s3 + $0x20] sm:$0xff]
        %v653 = vld [vmem:[%s3 + $0x28] sm:$0xff]
        %v654 = vld [vmem:[%s3 + $0x30] sm:$0xff]
        %v655 = vld [vmem:[%s3 + $0x38] sm:$0xff]
        %v656 = vld [vmem:[%s4] sm:$0x1]
        %v658 = vlaneseq
        %v659 = vshrl.u32 %v658, 7
        %v660 = vsub.s32 0, %v659
        %v661 = vrot.slane %v656, %v660
        %vm663 = vcmask 523264
        %v665 = vsel %vm663, %v623, 0
        %v668 = vsel %vm663, %v624, 0
        %v671 = vsel %vm663, %v625, 0
        %v674 = vsel %vm663, %v626, 0
        %v677 = vsel %vm663, %v627, 0
        %v680 = vsel %vm663, %v628, 0
        %v683 = vsel %vm663, %v629, 0
        %v686 = vsel %vm663, %v630, 0
        %v689 = vsel %vm663, %v631, 0
        %v692 = vsel %vm663, %v632, 0
        %v695 = vsel %vm663, %v633, 0
        %v698 = vsel %vm663, %v634, 0
        %v701 = vsel %vm663, %v635, 0
        %v704 = vsel %vm663, %v636, 0
        %v707 = vsel %vm663, %v637, 0
        %v710 = vsel %vm663, %v638, 0
        %v713 = vsel %vm663, %v639, 0
        %v716 = vsel %vm663, %v640, 0
        %v719 = vsel %vm663, %v641, 0
        %v722 = vsel %vm663, %v642, 0
        %v725 = vsel %vm663, %v643, 0
        %v728 = vsel %vm663, %v644, 0
        %v731 = vsel %vm663, %v645, 0
        %v734 = vsel %vm663, %v646, 0
        %v737 = vsel %vm663, %v647, 0
        %739 = vmatprep.subr.mxu0 0.0
        %740 = vmatpush1.msra.mxu0 %v648
        %741 = vmatprep.subr.mxu0 0.0
        %742 = vmatpush1.msra.mxu0 %v649
        %743 = vmatprep.subr.mxu0 0.0
        %744 = vmatpush1.msra.mxu0 %v650
        %745 = vmatprep.subr.mxu0 0.0
        %746 = vmatpush1.msra.mxu0 %v651
        %747 = vmatprep.subr.mxu0 0.0
        %748 = vmatpush1.msra.mxu0 %v652
        %749 = vmatprep.subr.mxu0 0.0
        %750 = vmatpush1.msra.mxu0 %v653
        %751 = vmatprep.subr.mxu0 0.0
        %752 = vmatpush1.msra.mxu0 %v654
        %753 = vmatprep.subr.mxu0 0.0
        %754 = vmatpush1.msra.mxu0 %v655
        %755 = vmatprep.subr.mxu0 0.0
        %756 = vmatpush1.msra.mxu0 0.0
        %757 = vmatprep.subr.mxu0 0.0
        %758 = vmatpush1.msra.mxu0 0.0
        %759 = vmatprep.subr.mxu0 0.0
        %760 = vmatpush1.msra.mxu0 0.0
        %761 = vmatprep.subr.mxu0 0.0
        %762 = vmatpush1.msra.mxu0 0.0
        %763 = vmatprep.subr.mxu0 0.0
        %764 = vmatpush1.msra.mxu0 0.0
        %765 = vmatprep.subr.mxu0 0.0
        %766 = vmatpush1.msra.mxu0 0.0
        %767 = vmatprep.subr.mxu0 0.0
        %768 = vmatpush1.msra.mxu0 0.0
        %769 = vmatprep.subr.mxu0 0.0
        %770 = vmatpush1.msra.mxu0 0.0
        %771 = vmatprep.subr.mxu0 0.0
        %772 = vmatpush1.msra.mxu0 0.0
        %773 = vmatprep.subr.mxu0 0.0
        %774 = vmatpush1.msra.mxu0 0.0
        %775 = vmatprep.subr.mxu0 0.0
        %776 = vmatpush1.msra.mxu0 0.0
        %777 = vmatprep.subr.mxu0 0.0
        %778 = vmatpush1.msra.mxu0 0.0
        %779 = vmatprep.subr.mxu0 0.0
        %780 = vmatpush1.msra.mxu0 0.0
        %781 = vmatprep.subr.mxu0 0.0
        %782 = vmatpush1.msra.mxu0 0.0
        %783 = vmatprep.subr.mxu0 0.0
        %784 = vmatpush1.msra.mxu0 0.0
        %785 = vmatprep.subr.mxu0 0.0
        %786 = vmatpush1.msra.mxu0 0.0
        %787 = vmatprep.subr.mxu0 0.0
        %788 = vmatpush1.msra.mxu0 0.0
        %789 = vmatprep.subr.mxu0 0.0
        %790 = vmatpush1.msra.mxu0 0.0
        %791 = vmatprep.subr.mxu0 0.0
        %792 = vmatpush1.msra.mxu0 0.0
        %793 = vmatprep.subr.mxu0 0.0
        %794 = vmatpush1.msra.mxu0 0.0
        %795 = vmatprep.subr.mxu0 0.0
        %796 = vmatpush1.msra.mxu0 0.0
        %797 = vmatprep.subr.mxu0 0.0
        %798 = vmatpush1.msra.mxu0 0.0
        %799 = vmatprep.subr.mxu0 0.0
        %800 = vmatpush1.msra.mxu0 0.0
        %801 = vmatprep.subr.mxu0 0.0
        %802 = vmatpush1.msra.mxu0 0.0
        %803 = vmatprep.mubr.f32.mxu0 0.0
        %804 = vmatmul.mubr.f32.gmra.mrb[0].mxu0 %v665
        %v805 = vpop.f32.mrb[0].mxu0
        %v806 = vadd.f32 %v661, %v805
        %v807 = vpop.f32.mrb[0].mxu0
        %808 = vmatprep.mubr.f32.mxu0 0.0
        %809 = vmatmul.mubr.f32.gmra.mrb[0].mxu0 %v668
        %v810 = vpop.f32.mrb[0].mxu0
        %v811 = vadd.f32 %v661, %v810
        %v812 = vpop.f32.mrb[0].mxu0
        %813 = vmatprep.mubr.f32.mxu0 0.0
        %814 = vmatmul.mubr.f32.gmra.mrb[0].mxu0 %v671
        %v815 = vpop.f32.mrb[0].mxu0
        %v816 = vadd.f32 %v661, %v815
        %v817 = vpop.f32.mrb[0].mxu0
        %818 = vmatprep.mubr.f32.mxu0 0.0
        %819 = vmatmul.mubr.f32.gmra.mrb[0].mxu0 %v674
        %v820 = vpop.f32.mrb[0].mxu0
        %v821 = vadd.f32 %v661, %v820
        %v822 = vpop.f32.mrb[0].mxu0
        %823 = vmatprep.mubr.f32.mxu0 0.0
        %824 = vmatmul.mubr.f32.gmra.mrb[0].mxu0 %v677
        %v825 = vpop.f32.mrb[0].mxu0
        %v826 = vadd.f32 %v661, %v825
        %v827 = vpop.f32.mrb[0].mxu0
        %828 = vmatprep.mubr.f32.mxu0 0.0
        %829 = vmatmul.mubr.f32.gmra.mrb[0].mxu0 %v680
        %v830 = vpop.f32.mrb[0].mxu0
        %v831 = vadd.f32 %v661, %v830
        %v832 = vpop.f32.mrb[0].mxu0
        %833 = vmatprep.mubr.f32.mxu0 0.0
        %834 = vmatmul.mubr.f32.gmra.mrb[0].mxu0 %v683
        %v835 = vpop.f32.mrb[0].mxu0
        %v836 = vadd.f32 %v661, %v835
        %v837 = vpop.f32.mrb[0].mxu0
        %838 = vmatprep.mubr.f32.mxu0 0.0
        %839 = vmatmul.mubr.f32.gmra.mrb[0].mxu0 %v686
        %v840 = vpop.f32.mrb[0].mxu0
        %v841 = vadd.f32 %v661, %v840
        %v842 = vpop.f32.mrb[0].mxu0
        %843 = vmatprep.mubr.f32.mxu0 0.0
        %844 = vmatmul.mubr.f32.gmra.mrb[0].mxu0 %v689
        %v845 = vpop.f32.mrb[0].mxu0
        %v846 = vadd.f32 %v661, %v845
        %v847 = vpop.f32.mrb[0].mxu0
        %848 = vmatprep.mubr.f32.mxu0 0.0
        %849 = vmatmul.mubr.f32.gmra.mrb[0].mxu0 %v692
        %v850 = vpop.f32.mrb[0].mxu0
        %v851 = vadd.f32 %v661, %v850
        %v852 = vpop.f32.mrb[0].mxu0
        %853 = vmatprep.mubr.f32.mxu0 0.0
        %854 = vmatmul.mubr.f32.gmra.mrb[0].mxu0 %v695
        %v855 = vpop.f32.mrb[0].mxu0
        %v856 = vadd.f32 %v661, %v855
        %v857 = vpop.f32.mrb[0].mxu0
        %858 = vmatprep.mubr.f32.mxu0 0.0
        %859 = vmatmul.mubr.f32.gmra.mrb[0].mxu0 %v698
        %v860 = vpop.f32.mrb[0].mxu0
        %v861 = vadd.f32 %v661, %v860
        %v862 = vpop.f32.mrb[0].mxu0
        %863 = vmatprep.mubr.f32.mxu0 0.0
        %864 = vmatmul.mubr.f32.gmra.mrb[0].mxu0 %v701
        %v865 = vpop.f32.mrb[0].mxu0
        %v866 = vadd.f32 %v661, %v865
        %v867 = vpop.f32.mrb[0].mxu0
        %868 = vmatprep.mubr.f32.mxu0 0.0
        %869 = vmatmul.mubr.f32.gmra.mrb[0].mxu0 %v704
        %v870 = vpop.f32.mrb[0].mxu0
        %v871 = vadd.f32 %v661, %v870
        %v872 = vpop.f32.mrb[0].mxu0
        %873 = vmatprep.mubr.f32.mxu0 0.0
        %874 = vmatmul.mubr.f32.gmra.mrb[0].mxu0 %v707
        %v875 = vpop.f32.mrb[0].mxu0
        %v876 = vadd.f32 %v661, %v875
        %v877 = vpop.f32.mrb[0].mxu0
        %878 = vmatprep.mubr.f32.mxu0 0.0
        %879 = vmatmul.mubr.f32.gmra.mrb[0].mxu0 %v710
        %v880 = vpop.f32.mrb[0].mxu0
        %v881 = vadd.f32 %v661, %v880
        %v882 = vpop.f32.mrb[0].mxu0
        %883 = vmatprep.mubr.f32.mxu0 0.0
        %884 = vmatmul.mubr.f32.gmra.mrb[0].mxu0 %v713
        %v885 = vpop.f32.mrb[0].mxu0
        %v886 = vadd.f32 %v661, %v885
        %v887 = vpop.f32.mrb[0].mxu0
        %888 = vmatprep.mubr.f32.mxu0 0.0
        %889 = vmatmul.mubr.f32.gmra.mrb[0].mxu0 %v716
        %v890 = vpop.f32.mrb[0].mxu0
        %v891 = vadd.f32 %v661, %v890
        %v892 = vpop.f32.mrb[0].mxu0
        %893 = vmatprep.mubr.f32.mxu0 0.0
        %894 = vmatmul.mubr.f32.gmra.mrb[0].mxu0 %v719
        %v895 = vpop.f32.mrb[0].mxu0
        %v896 = vadd.f32 %v661, %v895
        %v897 = vpop.f32.mrb[0].mxu0
        %898 = vmatprep.mubr.f32.mxu0 0.0
        %899 = vmatmul.mubr.f32.gmra.mrb[0].mxu0 %v722
        %v900 = vpop.f32.mrb[0].mxu0
        %v901 = vadd.f32 %v661, %v900
        %v902 = vpop.f32.mrb[0].mxu0
        %903 = vmatprep.mubr.f32.mxu0 0.0
        %904 = vmatmul.mubr.f32.gmra.mrb[0].mxu0 %v725
        %v905 = vpop.f32.mrb[0].mxu0
        %v906 = vadd.f32 %v661, %v905
        %v907 = vpop.f32.mrb[0].mxu0
        %908 = vmatprep.mubr.f32.mxu0 0.0
        %909 = vmatmul.mubr.f32.gmra.mrb[0].mxu0 %v728
        %v910 = vpop.f32.mrb[0].mxu0
        %v911 = vadd.f32 %v661, %v910
        %v912 = vpop.f32.mrb[0].mxu0
        %913 = vmatprep.mubr.f32.mxu0 0.0
        %914 = vmatmul.mubr.f32.gmra.mrb[0].mxu0 %v731
        %v915 = vpop.f32.mrb[0].mxu0
        %v916 = vadd.f32 %v661, %v915
        %v917 = vpop.f32.mrb[0].mxu0
        %918 = vmatprep.mubr.f32.mxu0 0.0
        %919 = vmatmul.mubr.f32.gmra.mrb[0].mxu0 %v734
        %v920 = vpop.f32.mrb[0].mxu0
        %v921 = vadd.f32 %v661, %v920
        %v922 = vpop.f32.mrb[0].mxu0
        %923 = vmatprep.mubr.f32.mxu0 0.0
        %924 = vmatmul.mubr.f32.gmra.mrb[0].mxu0 %v737
        %v925 = vpop.f32.mrb[0].mxu0
        %v926 = vadd.f32 %v661, %v925
        %v927 = vpop.f32.mrb[0].mxu0
        %928 = vdwg.mxu0
        %v929 = vtanh.pop %v806
        %v930 = vtanh.pop %v811
        %v931 = vtanh.pop %v816
        %v932 = vtanh.pop %v821
        %v933 = vtanh.pop %v826
        %v934 = vtanh.pop %v831
        %v935 = vtanh.pop %v836
        %v936 = vtanh.pop %v841
        %v937 = vtanh.pop %v846
        %v938 = vtanh.pop %v851
        %v939 = vtanh.pop %v856
        %v940 = vtanh.pop %v861
        %v941 = vtanh.pop %v866
        %v942 = vtanh.pop %v871
        %v943 = vtanh.pop %v876
        %v944 = vtanh.pop %v881
        %v945 = vtanh.pop %v886
        %v946 = vtanh.pop %v891
        %v947 = vtanh.pop %v896
        %v948 = vtanh.pop %v901
        %v949 = vtanh.pop %v906
        %v950 = vtanh.pop %v911
        %v951 = vtanh.pop %v916
        %v952 = vtanh.pop %v921
        %v953 = vtanh.pop %v926
        %v954 = vld [vmem:[#allocation2] sm:$0xff]
        %v955 = vld [vmem:[#allocation2 + $0x8] sm:$0xff]
        %v956 = vld [vmem:[#allocation2 + $0x10] sm:$0xff]
        %v957 = vld [vmem:[#allocation2 + $0x18] sm:$0xff]
        %v958 = vld [vmem:[#allocation2 + $0x20] sm:$0xff]
        %v959 = vld [vmem:[#allocation2 + $0x28] sm:$0xff]
        %v960 = vld [vmem:[#allocation2 + $0x30] sm:$0xff]
        %v961 = vld [vmem:[#allocation2 + $0x38] sm:$0xff]
        %v962 = vld [vmem:[#allocation2 + $0x40] sm:$0xff]
        %v963 = vld [vmem:[#allocation2 + $0x48] sm:$0xff]
        %v964 = vld [vmem:[#allocation2 + $0x50] sm:$0xff]
        %v965 = vld [vmem:[#allocation2 + $0x58] sm:$0xff]
        %v966 = vld [vmem:[#allocation2 + $0x60] sm:$0xff]
        %v967 = vld [vmem:[#allocation2 + $0x68] sm:$0xff]
        %v968 = vld [vmem:[#allocation2 + $0x70] sm:$0xff]
        %v969 = vld [vmem:[#allocation2 + $0x78] sm:$0xff]
        %v970 = vld [vmem:[#allocation2 + $0x80] sm:$0xff]
        %v971 = vld [vmem:[#allocation2 + $0x88] sm:$0xff]
        %v972 = vld [vmem:[#allocation2 + $0x90] sm:$0xff]
        %v973 = vld [vmem:[#allocation2 + $0x98] sm:$0xff]
        %v974 = vld [vmem:[#allocation2 + $0xa0] sm:$0xff]
        %v975 = vld [vmem:[#allocation2 + $0xa8] sm:$0xff]
        %v976 = vld [vmem:[#allocation2 + $0xb0] sm:$0xff]
        %v977 = vld [vmem:[#allocation2 + $0xb8] sm:$0xff]
        %v978 = vld [vmem:[#allocation2 + $0xc0] sm:$0xff]
        %v979 = vld [vmem:[#allocation2 + $0xc8] sm:$0xff]
        %v980 = vld [vmem:[#allocation2 + $0xd0] sm:$0xff]
        %v981 = vld [vmem:[#allocation2 + $0xd8] sm:$0xff]
        %v982 = vld [vmem:[#allocation2 + $0xe0] sm:$0xff]
        %v983 = vld [vmem:[#allocation2 + $0xe8] sm:$0xff]
        %v984 = vld [vmem:[#allocation2 + $0xf0] sm:$0xff]
        %v985 = vld [vmem:[#allocation2 + $0xf8] sm:$0xff]
        %v986 = vld [vmem:[#allocation2 + $0x100] sm:$0xff]
        %v987 = vld [vmem:[#allocation2 + $0x108] sm:$0xff]
        %v988 = vld [vmem:[#allocation2 + $0x110] sm:$0xff]
        %v989 = vld [vmem:[#allocation2 + $0x118] sm:$0xff]
        %v990 = vld [vmem:[#allocation2 + $0x120] sm:$0xff]
        %v991 = vld [vmem:[#allocation2 + $0x128] sm:$0xff]
        %v992 = vld [vmem:[#allocation2 + $0x130] sm:$0xff]
        %v993 = vld [vmem:[#allocation2 + $0x138] sm:$0xff]
        %v994 = vld [vmem:[#allocation2 + $0x140] sm:$0xff]
        %v995 = vld [vmem:[#allocation2 + $0x148] sm:$0xff]
        %v996 = vld [vmem:[#allocation2 + $0x150] sm:$0xff]
        %v997 = vld [vmem:[#allocation2 + $0x158] sm:$0xff]
        %v998 = vld [vmem:[#allocation2 + $0x160] sm:$0xff]
        %v999 = vld [vmem:[#allocation2 + $0x168] sm:$0xff]
        %v1000 = vld [vmem:[#allocation2 + $0x170] sm:$0xff]
        %v1001 = vld [vmem:[#allocation2 + $0x178] sm:$0xff]
        %v1002 = vld [vmem:[#allocation2 + $0x180] sm:$0xff]
        %v1003 = vld [vmem:[#allocation2 + $0x188] sm:$0xff]
        %v1004 = vld [vmem:[#allocation2 + $0x190] sm:$0xff]
        %v1005 = vld [vmem:[#allocation2 + $0x198] sm:$0xff]
        %v1006 = vld [vmem:[#allocation2 + $0x1a0] sm:$0xff]
        %v1007 = vld [vmem:[#allocation2 + $0x1a8] sm:$0xff]
        %v1008 = vld [vmem:[#allocation2 + $0x1b0] sm:$0xff]
        %v1009 = vld [vmem:[#allocation2 + $0x1b8] sm:$0xff]
        %v1010 = vld [vmem:[#allocation2 + $0x1c0] sm:$0xff]
        %v1011 = vld [vmem:[#allocation2 + $0x1c8] sm:$0xff]
        %v1012 = vld [vmem:[#allocation2 + $0x1d0] sm:$0xff]
        %v1013 = vld [vmem:[#allocation2 + $0x1d8] sm:$0xff]
        %v1014 = vld [vmem:[#allocation2 + $0x1e0] sm:$0xff]
        %v1015 = vld [vmem:[#allocation2 + $0x1e8] sm:$0xff]
        %v1016 = vld [vmem:[#allocation2 + $0x1f0] sm:$0xff]
        %v1017 = vld [vmem:[#allocation2 + $0x1f8] sm:$0xff]
        %v1018 = vld [vmem:[#allocation2 + $0x200] sm:$0xff]
        %v1019 = vld [vmem:[#allocation2 + $0x208] sm:$0xff]
        %v1020 = vld [vmem:[#allocation2 + $0x210] sm:$0xff]
        %v1021 = vld [vmem:[#allocation2 + $0x218] sm:$0xff]
        %v1022 = vld [vmem:[#allocation2 + $0x220] sm:$0xff]
        %v1023 = vld [vmem:[#allocation2 + $0x228] sm:$0xff]
        %v1024 = vld [vmem:[#allocation2 + $0x230] sm:$0xff]
        %v1025 = vld [vmem:[#allocation2 + $0x238] sm:$0xff]
        %v1026 = vld [vmem:[#allocation2 + $0x240] sm:$0xff]
        %v1027 = vld [vmem:[#allocation2 + $0x248] sm:$0xff]
        %v1028 = vld [vmem:[#allocation2 + $0x250] sm:$0xff]
        %v1029 = vld [vmem:[#allocation2 + $0x258] sm:$0xff]
        %v1030 = vld [vmem:[#allocation2 + $0x260] sm:$0xff]
        %v1031 = vld [vmem:[#allocation2 + $0x268] sm:$0xff]
        %v1032 = vld [vmem:[#allocation2 + $0x270] sm:$0xff]
        %v1033 = vld [vmem:[#allocation2 + $0x278] sm:$0xff]
        %v1034 = vld [vmem:[#allocation2 + $0x280] sm:$0xff]
        %v1035 = vld [vmem:[#allocation2 + $0x288] sm:$0xff]
        %v1036 = vld [vmem:[#allocation2 + $0x290] sm:$0xff]
        %v1037 = vld [vmem:[#allocation2 + $0x298] sm:$0xff]
        %v1038 = vld [vmem:[#allocation2 + $0x2a0] sm:$0xff]
        %v1039 = vld [vmem:[#allocation2 + $0x2a8] sm:$0xff]
        %v1040 = vld [vmem:[#allocation2 + $0x2b0] sm:$0xff]
        %v1041 = vld [vmem:[#allocation2 + $0x2b8] sm:$0xff]
        %v1042 = vld [vmem:[#allocation2 + $0x2c0] sm:$0xff]
        %v1043 = vld [vmem:[#allocation2 + $0x2c8] sm:$0xff]
        %v1044 = vld [vmem:[#allocation2 + $0x2d0] sm:$0xff]
        %v1045 = vld [vmem:[#allocation2 + $0x2d8] sm:$0xff]
        %v1046 = vld [vmem:[#allocation2 + $0x2e0] sm:$0xff]
        %v1047 = vld [vmem:[#allocation2 + $0x2e8] sm:$0xff]
        %v1048 = vld [vmem:[#allocation2 + $0x2f0] sm:$0xff]
        %v1049 = vld [vmem:[#allocation2 + $0x2f8] sm:$0xff]
        %v1050 = vld [vmem:[#allocation2 + $0x300] sm:$0xff]
        %v1051 = vld [vmem:[#allocation2 + $0x308] sm:$0xff]
        %v1052 = vld [vmem:[#allocation2 + $0x310] sm:$0xff]
        %v1053 = vld [vmem:[#allocation2 + $0x318] sm:$0xff]
        %v1054 = vld [vmem:[#allocation2 + $0x320] sm:$0xff]
        %v1055 = vld [vmem:[#allocation2 + $0x328] sm:$0xff]
        %v1056 = vld [vmem:[#allocation2 + $0x330] sm:$0xff]
        %v1057 = vld [vmem:[#allocation2 + $0x338] sm:$0xff]
        %v1058 = vld [vmem:[#allocation2 + $0x340] sm:$0xff]
        %v1059 = vld [vmem:[#allocation2 + $0x348] sm:$0xff]
        %v1060 = vld [vmem:[#allocation2 + $0x350] sm:$0xff]
        %v1061 = vld [vmem:[#allocation2 + $0x358] sm:$0xff]
        %v1062 = vld [vmem:[#allocation2 + $0x360] sm:$0xff]
        %v1063 = vld [vmem:[#allocation2 + $0x368] sm:$0xff]
        %v1064 = vld [vmem:[#allocation2 + $0x370] sm:$0xff]
        %v1065 = vld [vmem:[#allocation2 + $0x378] sm:$0xff]
        %v1066 = vld [vmem:[#allocation2 + $0x380] sm:$0xff]
        %v1067 = vld [vmem:[#allocation2 + $0x388] sm:$0xff]
        %v1068 = vld [vmem:[#allocation2 + $0x390] sm:$0xff]
        %v1069 = vld [vmem:[#allocation2 + $0x398] sm:$0xff]
        %v1070 = vld [vmem:[#allocation2 + $0x3a0] sm:$0xff]
        %v1071 = vld [vmem:[#allocation2 + $0x3a8] sm:$0xff]
        %v1072 = vld [vmem:[#allocation2 + $0x3b0] sm:$0xff]
        %v1073 = vld [vmem:[#allocation2 + $0x3b8] sm:$0xff]
        %v1074 = vld [vmem:[#allocation2 + $0x3c0] sm:$0xff]
        %v1075 = vld [vmem:[#allocation2 + $0x3c8] sm:$0xff]
        %v1076 = vld [vmem:[#allocation2 + $0x3d0] sm:$0xff]
        %v1077 = vld [vmem:[#allocation2 + $0x3d8] sm:$0xff]
        %v1078 = vld [vmem:[#allocation2 + $0x3e0] sm:$0xff]
        %v1079 = vld [vmem:[#allocation2 + $0x3e8] sm:$0xff]
        %v1080 = vld [vmem:[#allocation2 + $0x3f0] sm:$0xff]
        %v1081 = vld [vmem:[#allocation2 + $0x3f8] sm:$0xff]
        %v1082 = vld [vmem:[%s6] sm:$0xff]
        %v1084 = vlaneseq
        %v1085 = vshrl.u32 %v1084, 7
        %v1086 = vsub.s32 0, %v1085
        %v1087 = vrot.slane %v1082, %v1086
        %v1088 = vlaneseq
        %v1089 = vshrl.u32 %v1088, 7
        %v1090 = vsub.s32 1, %v1089
        %v1091 = vrot.slane %v1082, %v1090
        %v1092 = vlaneseq
        %v1093 = vshrl.u32 %v1092, 7
        %v1094 = vsub.s32 2, %v1093
        %v1095 = vrot.slane %v1082, %v1094
        %v1096 = vlaneseq
        %v1097 = vshrl.u32 %v1096, 7
        %v1098 = vsub.s32 3, %v1097
        %v1099 = vrot.slane %v1082, %v1098
        %v1100 = vlaneseq
        %v1101 = vshrl.u32 %v1100, 7
        %v1102 = vsub.s32 4, %v1101
        %v1103 = vrot.slane %v1082, %v1102
        %v1104 = vlaneseq
        %v1105 = vshrl.u32 %v1104, 7
        %v1106 = vsub.s32 5, %v1105
        %v1107 = vrot.slane %v1082, %v1106
        %v1108 = vlaneseq
        %v1109 = vshrl.u32 %v1108, 7
        %v1110 = vsub.s32 6, %v1109
        %v1111 = vrot.slane %v1082, %v1110
        %v1112 = vlaneseq
        %v1113 = vshrl.u32 %v1112, 7
        %v1114 = vsub.s32 7, %v1113
        %v1115 = vrot.slane %v1082, %v1114
        %1124 = vmatprep.subr.mxu0 %v955
        %1125 = vmatpush1.msra.mxu0 %v954
        %1126 = vmatprep.subr.mxu0 %v963
        %1127 = vmatpush1.msra.mxu0 %v962
        %1128 = vmatprep.subr.mxu0 %v971
        %1129 = vmatpush1.msra.mxu0 %v970
        %1130 = vmatprep.subr.mxu0 %v979
        %1131 = vmatpush1.msra.mxu0 %v978
        %1132 = vmatprep.subr.mxu0 %v987
        %1133 = vmatpush1.msra.mxu0 %v986
        %1134 = vmatprep.subr.mxu0 %v995
        %1135 = vmatpush1.msra.mxu0 %v994
        %1136 = vmatprep.subr.mxu0 %v1003
        %1137 = vmatpush1.msra.mxu0 %v1002
        %1138 = vmatprep.subr.mxu0 %v1011
        %1139 = vmatpush1.msra.mxu0 %v1010
        %1140 = vmatprep.subr.mxu0 %v1019
        %1141 = vmatpush1.msra.mxu0 %v1018
        %1142 = vmatprep.subr.mxu0 %v1027
        %1143 = vmatpush1.msra.mxu0 %v1026
        %1144 = vmatprep.subr.mxu0 %v1035
        %1145 = vmatpush1.msra.mxu0 %v1034
        %1146 = vmatprep.subr.mxu0 %v1043
        %1147 = vmatpush1.msra.mxu0 %v1042
        %1148 = vmatprep.subr.mxu0 %v1051
        %1149 = vmatpush1.msra.mxu0 %v1050
        %1150 = vmatprep.subr.mxu0 %v1059
        %1151 = vmatpush1.msra.mxu0 %v1058
        %1152 = vmatprep.subr.mxu0 %v1067
        %1153 = vmatpush1.msra.mxu0 %v1066
        %1154 = vmatprep.subr.mxu0 %v1075
        %1155 = vmatpush1.msra.mxu0 %v1074
        %1156 = vmatprep.subr.mxu0 0.0
        %1157 = vmatpush1.msra.mxu0 0.0
        %1158 = vmatprep.subr.mxu0 0.0
        %1159 = vmatpush1.msra.mxu0 0.0
        %1160 = vmatprep.subr.mxu0 0.0
        %1161 = vmatpush1.msra.mxu0 0.0
        %1162 = vmatprep.subr.mxu0 0.0
        %1163 = vmatpush1.msra.mxu0 0.0
        %1164 = vmatprep.subr.mxu0 0.0
        %1165 = vmatpush1.msra.mxu0 0.0
        %1166 = vmatprep.subr.mxu0 0.0
        %1167 = vmatpush1.msra.mxu0 0.0
        %1168 = vmatprep.subr.mxu0 0.0
        %1169 = vmatpush1.msra.mxu0 0.0
        %1170 = vmatprep.subr.mxu0 0.0
        %1171 = vmatpush1.msra.mxu0 0.0
        %1172 = vmatprep.subr.mxu0 0.0
        %1173 = vmatpush1.msra.mxu0 0.0
        %1174 = vmatprep.subr.mxu0 0.0
        %1175 = vmatpush1.msra.mxu0 0.0
        %1176 = vmatprep.subr.mxu0 0.0
        %1177 = vmatpush1.msra.mxu0 0.0
        %1178 = vmatprep.subr.mxu0 0.0
        %1179 = vmatpush1.msra.mxu0 0.0
        %1180 = vmatprep.subr.mxu0 0.0
        %1181 = vmatpush1.msra.mxu0 0.0
        %1182 = vmatprep.subr.mxu0 0.0
        %1183 = vmatpush1.msra.mxu0 0.0
        %1184 = vmatprep.subr.mxu0 0.0
        %1185 = vmatpush1.msra.mxu0 0.0
        %1186 = vmatprep.subr.mxu0 0.0
        %1187 = vmatpush1.msra.mxu0 0.0
        %1188 = vmatprep.mubr.f32.mxu0 0.0
        %1189 = vmatmul.mubr.f32.gmra.mrb[0].mxu0 %v929
        %v1190 = vpop.f32.mrb[0].mxu0
        %v1191 = vadd.f32 %v1087, %v1190
        %v1192 = vpop.f32.mrb[0].mxu0
        %v1193 = vadd.f32 %v1091, %v1192
        %1194 = vmatprep.mubr.f32.mxu0 0.0
        %1195 = vmatmul.mubr.f32.gmra.mrb[0].mxu0 %v930
        %v1196 = vpop.f32.mrb[0].mxu0
        %v1197 = vadd.f32 %v1087, %v1196
        %v1198 = vpop.f32.mrb[0].mxu0
        %v1199 = vadd.f32 %v1091, %v1198
        %1200 = vmatprep.mubr.f32.mxu0 0.0
        %1201 = vmatmul.mubr.f32.gmra.mrb[0].mxu0 %v931
        %v1202 = vpop.f32.mrb[0].mxu0
        %v1203 = vadd.f32 %v1087, %v1202
        %v1204 = vpop.f32.mrb[0].mxu0
        %v1205 = vadd.f32 %v1091, %v1204
        %1206 = vmatprep.mubr.f32.mxu0 0.0
        %1207 = vmatmul.mubr.f32.gmra.mrb[0].mxu0 %v932
        %v1208 = vpop.f32.mrb[0].mxu0
        %v1209 = vadd.f32 %v1087, %v1208
        %v1210 = vpop.f32.mrb[0].mxu0
        %v1211 = vadd.f32 %v1091, %v1210
        %1212 = vmatprep.mubr.f32.mxu0 0.0
        %1213 = vmatmul.mubr.f32.gmra.mrb[0].mxu0 %v933
        %v1214 = vpop.f32.mrb[0].mxu0
        %v1215 = vadd.f32 %v1087, %v1214
        %v1216 = vpop.f32.mrb[0].mxu0
        %v1217 = vadd.f32 %v1091, %v1216
        %1218 = vmatprep.mubr.f32.mxu0 0.0
        %1219 = vmatmul.mubr.f32.gmra.mrb[0].mxu0 %v934
        %v1220 = vpop.f32.mrb[0].mxu0
        %v1221 = vadd.f32 %v1087, %v1220
        %v1222 = vpop.f32.mrb[0].mxu0
        %v1223 = vadd.f32 %v1091, %v1222
        %1224 = vmatprep.mubr.f32.mxu0 0.0
        %1225 = vmatmul.mubr.f32.gmra.mrb[0].mxu0 %v935
        %v1226 = vpop.f32.mrb[0].mxu0
        %v1227 = vadd.f32 %v1087, %v1226
        %v1228 = vpop.f32.mrb[0].mxu0
        %v1229 = vadd.f32 %v1091, %v1228
        %1230 = vmatprep.mubr.f32.mxu0 0.0
        %1231 = vmatmul.mubr.f32.gmra.mrb[0].mxu0 %v936
        %v1232 = vpop.f32.mrb[0].mxu0
        %v1233 = vadd.f32 %v1087, %v1232
        %v1234 = vpop.f32.mrb[0].mxu0
        %v1235 = vadd.f32 %v1091, %v1234
        %1236 = vmatprep.mubr.f32.mxu0 0.0
        %1237 = vmatmul.mubr.f32.gmra.mrb[0].mxu0 %v937
        %v1238 = vpop.f32.mrb[0].mxu0
        %v1239 = vadd.f32 %v1087, %v1238
        %v1240 = vpop.f32.mrb[0].mxu0
        %v1241 = vadd.f32 %v1091, %v1240
        %1242 = vmatprep.mubr.f32.mxu0 0.0
        %1243 = vmatmul.mubr.f32.gmra.mrb[0].mxu0 %v938
        %v1244 = vpop.f32.mrb[0].mxu0
        %v1245 = vadd.f32 %v1087, %v1244
        %v1246 = vpop.f32.mrb[0].mxu0
        %v1247 = vadd.f32 %v1091, %v1246
        %1248 = vmatprep.mubr.f32.mxu0 0.0
        %1249 = vmatmul.mubr.f32.gmra.mrb[0].mxu0 %v939
        %v1250 = vpop.f32.mrb[0].mxu0
        %v1251 = vadd.f32 %v1087, %v1250
        %v1252 = vpop.f32.mrb[0].mxu0
        %v1253 = vadd.f32 %v1091, %v1252
        %1254 = vmatprep.mubr.f32.mxu0 0.0
        %1255 = vmatmul.mubr.f32.gmra.mrb[0].mxu0 %v940
        %v1256 = vpop.f32.mrb[0].mxu0
        %v1257 = vadd.f32 %v1087, %v1256
        %v1258 = vpop.f32.mrb[0].mxu0
        %v1259 = vadd.f32 %v1091, %v1258
        %1260 = vmatprep.mubr.f32.mxu0 0.0
        %1261 = vmatmul.mubr.f32.gmra.mrb[0].mxu0 %v941
        %v1262 = vpop.f32.mrb[0].mxu0
        %v1263 = vadd.f32 %v1087, %v1262
        %v1264 = vpop.f32.mrb[0].mxu0
        %v1265 = vadd.f32 %v1091, %v1264
        %1266 = vmatprep.mubr.f32.mxu0 0.0
        %1267 = vmatmul.mubr.f32.gmra.mrb[0].mxu0 %v942
        %v1268 = vpop.f32.mrb[0].mxu0
        %v1269 = vadd.f32 %v1087, %v1268
        %v1270 = vpop.f32.mrb[0].mxu0
        %v1271 = vadd.f32 %v1091, %v1270
        %1272 = vmatprep.mubr.f32.mxu0 0.0
        %1273 = vmatmul.mubr.f32.gmra.mrb[0].mxu0 %v943
        %v1274 = vpop.f32.mrb[0].mxu0
        %v1275 = vadd.f32 %v1087, %v1274
        %v1276 = vpop.f32.mrb[0].mxu0
        %v1277 = vadd.f32 %v1091, %v1276
        %1278 = vmatprep.mubr.f32.mxu0 0.0
        %1279 = vmatmul.mubr.f32.gmra.mrb[0].mxu0 %v944
        %v1280 = vpop.f32.mrb[0].mxu0
        %v1281 = vadd.f32 %v1087, %v1280
        %v1282 = vpop.f32.mrb[0].mxu0
        %v1283 = vadd.f32 %v1091, %v1282
        %1284 = vmatprep.mubr.f32.mxu0 0.0
        %1285 = vmatmul.mubr.f32.gmra.mrb[0].mxu0 %v945
        %v1286 = vpop.f32.mrb[0].mxu0
        %v1287 = vadd.f32 %v1087, %v1286
        %v1288 = vpop.f32.mrb[0].mxu0
        %v1289 = vadd.f32 %v1091, %v1288
        %1290 = vmatprep.mubr.f32.mxu0 0.0
        %1291 = vmatmul.mubr.f32.gmra.mrb[0].mxu0 %v946
        %v1292 = vpop.f32.mrb[0].mxu0
        %v1293 = vadd.f32 %v1087, %v1292
        %v1294 = vpop.f32.mrb[0].mxu0
        %v1295 = vadd.f32 %v1091, %v1294
        %1296 = vmatprep.mubr.f32.mxu0 0.0
        %1297 = vmatmul.mubr.f32.gmra.mrb[0].mxu0 %v947
        %v1298 = vpop.f32.mrb[0].mxu0
        %v1299 = vadd.f32 %v1087, %v1298
        %v1300 = vpop.f32.mrb[0].mxu0
        %v1301 = vadd.f32 %v1091, %v1300
        %1302 = vmatprep.mubr.f32.mxu0 0.0
        %1303 = vmatmul.mubr.f32.gmra.mrb[0].mxu0 %v948
        %v1304 = vpop.f32.mrb[0].mxu0
        %v1305 = vadd.f32 %v1087, %v1304
        %v1306 = vpop.f32.mrb[0].mxu0
        %v1307 = vadd.f32 %v1091, %v1306
        %1308 = vmatprep.mubr.f32.mxu0 0.0
        %1309 = vmatmul.mubr.f32.gmra.mrb[0].mxu0 %v949
        %v1310 = vpop.f32.mrb[0].mxu0
        %v1311 = vadd.f32 %v1087, %v1310
        %v1312 = vpop.f32.mrb[0].mxu0
        %v1313 = vadd.f32 %v1091, %v1312
        %1314 = vmatprep.mubr.f32.mxu0 0.0
        %1315 = vmatmul.mubr.f32.gmra.mrb[0].mxu0 %v950
        %v1316 = vpop.f32.mrb[0].mxu0
        %v1317 = vadd.f32 %v1087, %v1316
        %v1318 = vpop.f32.mrb[0].mxu0
        %v1319 = vadd.f32 %v1091, %v1318
        %1320 = vmatprep.mubr.f32.mxu0 0.0
        %1321 = vmatmul.mubr.f32.gmra.mrb[0].mxu0 %v951
        %v1322 = vpop.f32.mrb[0].mxu0
        %v1323 = vadd.f32 %v1087, %v1322
        %v1324 = vpop.f32.mrb[0].mxu0
        %v1325 = vadd.f32 %v1091, %v1324
        %1326 = vmatprep.mubr.f32.mxu0 0.0
        %1327 = vmatmul.mubr.f32.gmra.mrb[0].mxu0 %v952
        %v1328 = vpop.f32.mrb[0].mxu0
        %v1329 = vadd.f32 %v1087, %v1328
        %v1330 = vpop.f32.mrb[0].mxu0
        %v1331 = vadd.f32 %v1091, %v1330
        %1332 = vmatprep.mubr.f32.mxu0 0.0
        %1333 = vmatmul.mubr.f32.gmra.mrb[0].mxu0 %v953
        %v1334 = vpop.f32.mrb[0].mxu0
        %v1335 = vadd.f32 %v1087, %v1334
        %v1336 = vpop.f32.mrb[0].mxu0
        %v1337 = vadd.f32 %v1091, %v1336
        %1338 = vdwg.mxu0
        %1339 = vmatprep.subr.mxu0 %v957
        %1340 = vmatpush1.msra.mxu0 %v956
        %1341 = vmatprep.subr.mxu0 %v965
        %1342 = vmatpush1.msra.mxu0 %v964
        %1343 = vmatprep.subr.mxu0 %v973
        %1344 = vmatpush1.msra.mxu0 %v972
        %1345 = vmatprep.subr.mxu0 %v981
        %1346 = vmatpush1.msra.mxu0 %v980
        %1347 = vmatprep.subr.mxu0 %v989
        %1348 = vmatpush1.msra.mxu0 %v988
        %1349 = vmatprep.subr.mxu0 %v997
        %1350 = vmatpush1.msra.mxu0 %v996
        %1351 = vmatprep.subr.mxu0 %v1005
        %1352 = vmatpush1.msra.mxu0 %v1004
        %1353 = vmatprep.subr.mxu0 %v1013
        %1354 = vmatpush1.msra.mxu0 %v1012
        %1355 = vmatprep.subr.mxu0 %v1021
        %1356 = vmatpush1.msra.mxu0 %v1020
        %1357 = vmatprep.subr.mxu0 %v1029
        %1358 = vmatpush1.msra.mxu0 %v1028
        %1359 = vmatprep.subr.mxu0 %v1037
        %1360 = vmatpush1.msra.mxu0 %v1036
        %1361 = vmatprep.subr.mxu0 %v1045
        %1362 = vmatpush1.msra.mxu0 %v1044
        %1363 = vmatprep.subr.mxu0 %v1053
        %1364 = vmatpush1.msra.mxu0 %v1052
        %1365 = vmatprep.subr.mxu0 %v1061
        %1366 = vmatpush1.msra.mxu0 %v1060
        %1367 = vmatprep.subr.mxu0 %v1069
        %1368 = vmatpush1.msra.mxu0 %v1068
        %1369 = vmatprep.subr.mxu0 %v1077
        %1370 = vmatpush1.msra.mxu0 %v1076
        %1371 = vmatprep.subr.mxu0 0.0
        %1372 = vmatpush1.msra.mxu0 0.0
        %1373 = vmatprep.subr.mxu0 0.0
        %1374 = vmatpush1.msra.mxu0 0.0
        %1375 = vmatprep.subr.mxu0 0.0
        %1376 = vmatpush1.msra.mxu0 0.0
        %1377 = vmatprep.subr.mxu0 0.0
        %1378 = vmatpush1.msra.mxu0 0.0
        %1379 = vmatprep.subr.mxu0 0.0
        %1380 = vmatpush1.msra.mxu0 0.0
        %1381 = vmatprep.subr.mxu0 0.0
        %1382 = vmatpush1.msra.mxu0 0.0
        %1383 = vmatprep.subr.mxu0 0.0
        %1384 = vmatpush1.msra.mxu0 0.0
        %1385 = vmatprep.subr.mxu0 0.0
        %1386 = vmatpush1.msra.mxu0 0.0
        %1387 = vmatprep.subr.mxu0 0.0
        %1388 = vmatpush1.msra.mxu0 0.0
        %1389 = vmatprep.subr.mxu0 0.0
        %1390 = vmatpush1.msra.mxu0 0.0
        %1391 = vmatprep.subr.mxu0 0.0
        %1392 = vmatpush1.msra.mxu0 0.0
        %1393 = vmatprep.subr.mxu0 0.0
        %1394 = vmatpush1.msra.mxu0 0.0
        %1395 = vmatprep.subr.mxu0 0.0
        %1396 = vmatpush1.msra.mxu0 0.0
        %1397 = vmatprep.subr.mxu0 0.0
        %1398 = vmatpush1.msra.mxu0 0.0
        %1399 = vmatprep.subr.mxu0 0.0
        %1400 = vmatpush1.msra.mxu0 0.0
        %1401 = vmatprep.subr.mxu0 0.0
        %1402 = vmatpush1.msra.mxu0 0.0
        %1403 = vmatprep.mubr.f32.mxu0 0.0
        %1404 = vmatmul.mubr.f32.gmra.mrb[0].mxu0 %v929
        %v1405 = vpop.f32.mrb[0].mxu0
        %v1406 = vadd.f32 %v1095, %v1405
        %v1407 = vpop.f32.mrb[0].mxu0
        %v1408 = vadd.f32 %v1099, %v1407
        %1409 = vmatprep.mubr.f32.mxu0 0.0
        %1410 = vmatmul.mubr.f32.gmra.mrb[0].mxu0 %v930
        %v1411 = vpop.f32.mrb[0].mxu0
        %v1412 = vadd.f32 %v1095, %v1411
        %v1413 = vpop.f32.mrb[0].mxu0
        %v1414 = vadd.f32 %v1099, %v1413
        %1415 = vmatprep.mubr.f32.mxu0 0.0
        %1416 = vmatmul.mubr.f32.gmra.mrb[0].mxu0 %v931
        %v1417 = vpop.f32.mrb[0].mxu0
        %v1418 = vadd.f32 %v1095, %v1417
        %v1419 = vpop.f32.mrb[0].mxu0
        %v1420 = vadd.f32 %v1099, %v1419
        %1421 = vmatprep.mubr.f32.mxu0 0.0
        %1422 = vmatmul.mubr.f32.gmra.mrb[0].mxu0 %v932
        %v1423 = vpop.f32.mrb[0].mxu0
        %v1424 = vadd.f32 %v1095, %v1423
        %v1425 = vpop.f32.mrb[0].mxu0
        %v1426 = vadd.f32 %v1099, %v1425
        %1427 = vmatprep.mubr.f32.mxu0 0.0
        %1428 = vmatmul.mubr.f32.gmra.mrb[0].mxu0 %v933
        %v1429 = vpop.f32.mrb[0].mxu0
        %v1430 = vadd.f32 %v1095, %v1429
        %v1431 = vpop.f32.mrb[0].mxu0
        %v1432 = vadd.f32 %v1099, %v1431
        %1433 = vmatprep.mubr.f32.mxu0 0.0
        %1434 = vmatmul.mubr.f32.gmra.mrb[0].mxu0 %v934
        %v1435 = vpop.f32.mrb[0].mxu0
        %v1436 = vadd.f32 %v1095, %v1435
        %v1437 = vpop.f32.mrb[0].mxu0
        %v1438 = vadd.f32 %v1099, %v1437
        %1439 = vmatprep.mubr.f32.mxu0 0.0
        %1440 = vmatmul.mubr.f32.gmra.mrb[0].mxu0 %v935
        %v1441 = vpop.f32.mrb[0].mxu0
        %v1442 = vadd.f32 %v1095, %v1441
        %v1443 = vpop.f32.mrb[0].mxu0
        %v1444 = vadd.f32 %v1099, %v1443
        %1445 = vmatprep.mubr.f32.mxu0 0.0
        %1446 = vmatmul.mubr.f32.gmra.mrb[0].mxu0 %v936
        %v1447 = vpop.f32.mrb[0].mxu0
        %v1448 = vadd.f32 %v1095, %v1447
        %v1449 = vpop.f32.mrb[0].mxu0
        %v1450 = vadd.f32 %v1099, %v1449
        %1451 = vmatprep.mubr.f32.mxu0 0.0
        %1452 = vmatmul.mubr.f32.gmra.mrb[0].mxu0 %v937
        %v1453 = vpop.f32.mrb[0].mxu0
        %v1454 = vadd.f32 %v1095, %v1453
        %v1455 = vpop.f32.mrb[0].mxu0
        %v1456 = vadd.f32 %v1099, %v1455
        %1457 = vmatprep.mubr.f32.mxu0 0.0
        %1458 = vmatmul.mubr.f32.gmra.mrb[0].mxu0 %v938
        %v1459 = vpop.f32.mrb[0].mxu0
        %v1460 = vadd.f32 %v1095, %v1459
        %v1461 = vpop.f32.mrb[0].mxu0
        %v1462 = vadd.f32 %v1099, %v1461
        %1463 = vmatprep.mubr.f32.mxu0 0.0
        %1464 = vmatmul.mubr.f32.gmra.mrb[0].mxu0 %v939
        %v1465 = vpop.f32.mrb[0].mxu0
        %v1466 = vadd.f32 %v1095, %v1465
        %v1467 = vpop.f32.mrb[0].mxu0
        %v1468 = vadd.f32 %v1099, %v1467
        %1469 = vmatprep.mubr.f32.mxu0 0.0
        %1470 = vmatmul.mubr.f32.gmra.mrb[0].mxu0 %v940
        %v1471 = vpop.f32.mrb[0].mxu0
        %v1472 = vadd.f32 %v1095, %v1471
        %v1473 = vpop.f32.mrb[0].mxu0
        %v1474 = vadd.f32 %v1099, %v1473
        %1475 = vmatprep.mubr.f32.mxu0 0.0
        %1476 = vmatmul.mubr.f32.gmra.mrb[0].mxu0 %v941
        %v1477 = vpop.f32.mrb[0].mxu0
        %v1478 = vadd.f32 %v1095, %v1477
        %v1479 = vpop.f32.mrb[0].mxu0
        %v1480 = vadd.f32 %v1099, %v1479
        %1481 = vmatprep.mubr.f32.mxu0 0.0
        %1482 = vmatmul.mubr.f32.gmra.mrb[0].mxu0 %v942
        %v1483 = vpop.f32.mrb[0].mxu0
        %v1484 = vadd.f32 %v1095, %v1483
        %v1485 = vpop.f32.mrb[0].mxu0
        %v1486 = vadd.f32 %v1099, %v1485
        %1487 = vmatprep.mubr.f32.mxu0 0.0
        %1488 = vmatmul.mubr.f32.gmra.mrb[0].mxu0 %v943
        %v1489 = vpop.f32.mrb[0].mxu0
        %v1490 = vadd.f32 %v1095, %v1489
        %v1491 = vpop.f32.mrb[0].mxu0
        %v1492 = vadd.f32 %v1099, %v1491
        %1493 = vmatprep.mubr.f32.mxu0 0.0
        %1494 = vmatmul.mubr.f32.gmra.mrb[0].mxu0 %v944
        %v1495 = vpop.f32.mrb[0].mxu0
        %v1496 = vadd.f32 %v1095, %v1495
        %v1497 = vpop.f32.mrb[0].mxu0
        %v1498 = vadd.f32 %v1099, %v1497
        %1499 = vmatprep.mubr.f32.mxu0 0.0
        %1500 = vmatmul.mubr.f32.gmra.mrb[0].mxu0 %v945
        %v1501 = vpop.f32.mrb[0].mxu0
        %v1502 = vadd.f32 %v1095, %v1501
        %v1503 = vpop.f32.mrb[0].mxu0
        %v1504 = vadd.f32 %v1099, %v1503
        %1505 = vmatprep.mubr.f32.mxu0 0.0
        %1506 = vmatmul.mubr.f32.gmra.mrb[0].mxu0 %v946
        %v1507 = vpop.f32.mrb[0].mxu0
        %v1508 = vadd.f32 %v1095, %v1507
        %v1509 = vpop.f32.mrb[0].mxu0
        %v1510 = vadd.f32 %v1099, %v1509
        %1511 = vmatprep.mubr.f32.mxu0 0.0
        %1512 = vmatmul.mubr.f32.gmra.mrb[0].mxu0 %v947
        %v1513 = vpop.f32.mrb[0].mxu0
        %v1514 = vadd.f32 %v1095, %v1513
        %v1515 = vpop.f32.mrb[0].mxu0
        %v1516 = vadd.f32 %v1099, %v1515
        %1517 = vmatprep.mubr.f32.mxu0 0.0
        %1518 = vmatmul.mubr.f32.gmra.mrb[0].mxu0 %v948
        %v1519 = vpop.f32.mrb[0].mxu0
        %v1520 = vadd.f32 %v1095, %v1519
        %v1521 = vpop.f32.mrb[0].mxu0
        %v1522 = vadd.f32 %v1099, %v1521
        %1523 = vmatprep.mubr.f32.mxu0 0.0
        %1524 = vmatmul.mubr.f32.gmra.mrb[0].mxu0 %v949
        %v1525 = vpop.f32.mrb[0].mxu0
        %v1526 = vadd.f32 %v1095, %v1525
        %v1527 = vpop.f32.mrb[0].mxu0
        %v1528 = vadd.f32 %v1099, %v1527
        %1529 = vmatprep.mubr.f32.mxu0 0.0
        %1530 = vmatmul.mubr.f32.gmra.mrb[0].mxu0 %v950
        %v1531 = vpop.f32.mrb[0].mxu0
        %v1532 = vadd.f32 %v1095, %v1531
        %v1533 = vpop.f32.mrb[0].mxu0
        %v1534 = vadd.f32 %v1099, %v1533
        %1535 = vmatprep.mubr.f32.mxu0 0.0
        %1536 = vmatmul.mubr.f32.gmra.mrb[0].mxu0 %v951
        %v1537 = vpop.f32.mrb[0].mxu0
        %v1538 = vadd.f32 %v1095, %v1537
        %v1539 = vpop.f32.mrb[0].mxu0
        %v1540 = vadd.f32 %v1099, %v1539
        %1541 = vmatprep.mubr.f32.mxu0 0.0
        %1542 = vmatmul.mubr.f32.gmra.mrb[0].mxu0 %v952
        %v1543 = vpop.f32.mrb[0].mxu0
        %v1544 = vadd.f32 %v1095, %v1543
        %v1545 = vpop.f32.mrb[0].mxu0
        %v1546 = vadd.f32 %v1099, %v1545
        %1547 = vmatprep.mubr.f32.mxu0 0.0
        %1548 = vmatmul.mubr.f32.gmra.mrb[0].mxu0 %v953
        %v1549 = vpop.f32.mrb[0].mxu0
        %v1550 = vadd.f32 %v1095, %v1549
        %v1551 = vpop.f32.mrb[0].mxu0
        %v1552 = vadd.f32 %v1099, %v1551
        %1553 = vdwg.mxu0
        %1554 = vmatprep.subr.mxu0 %v959
        %1555 = vmatpush1.msra.mxu0 %v958
        %1556 = vmatprep.subr.mxu0 %v967
        %1557 = vmatpush1.msra.mxu0 %v966
        %1558 = vmatprep.subr.mxu0 %v975
        %1559 = vmatpush1.msra.mxu0 %v974
        %1560 = vmatprep.subr.mxu0 %v983
        %1561 = vmatpush1.msra.mxu0 %v982
        %1562 = vmatprep.subr.mxu0 %v991
        %1563 = vmatpush1.msra.mxu0 %v990
        %1564 = vmatprep.subr.mxu0 %v999
        %1565 = vmatpush1.msra.mxu0 %v998
        %1566 = vmatprep.subr.mxu0 %v1007
        %1567 = vmatpush1.msra.mxu0 %v1006
        %1568 = vmatprep.subr.mxu0 %v1015
        %1569 = vmatpush1.msra.mxu0 %v1014
        %1570 = vmatprep.subr.mxu0 %v1023
        %1571 = vmatpush1.msra.mxu0 %v1022
        %1572 = vmatprep.subr.mxu0 %v1031
        %1573 = vmatpush1.msra.mxu0 %v1030
        %1574 = vmatprep.subr.mxu0 %v1039
        %1575 = vmatpush1.msra.mxu0 %v1038
        %1576 = vmatprep.subr.mxu0 %v1047
        %1577 = vmatpush1.msra.mxu0 %v1046
        %1578 = vmatprep.subr.mxu0 %v1055
        %1579 = vmatpush1.msra.mxu0 %v1054
        %1580 = vmatprep.subr.mxu0 %v1063
        %1581 = vmatpush1.msra.mxu0 %v1062
        %1582 = vmatprep.subr.mxu0 %v1071
        %1583 = vmatpush1.msra.mxu0 %v1070
        %1584 = vmatprep.subr.mxu0 %v1079
        %1585 = vmatpush1.msra.mxu0 %v1078
        %1586 = vmatprep.subr.mxu0 0.0
        %1587 = vmatpush1.msra.mxu0 0.0
        %1588 = vmatprep.subr.mxu0 0.0
        %1589 = vmatpush1.msra.mxu0 0.0
        %1590 = vmatprep.subr.mxu0 0.0
        %1591 = vmatpush1.msra.mxu0 0.0
        %1592 = vmatprep.subr.mxu0 0.0
        %1593 = vmatpush1.msra.mxu0 0.0
        %1594 = vmatprep.subr.mxu0 0.0
        %1595 = vmatpush1.msra.mxu0 0.0
        %1596 = vmatprep.subr.mxu0 0.0
        %1597 = vmatpush1.msra.mxu0 0.0
        %1598 = vmatprep.subr.mxu0 0.0
        %1599 = vmatpush1.msra.mxu0 0.0
        %1600 = vmatprep.subr.mxu0 0.0
        %1601 = vmatpush1.msra.mxu0 0.0
        %1602 = vmatprep.subr.mxu0 0.0
        %1603 = vmatpush1.msra.mxu0 0.0
        %1604 = vmatprep.subr.mxu0 0.0
        %1605 = vmatpush1.msra.mxu0 0.0
        %1606 = vmatprep.subr.mxu0 0.0
        %1607 = vmatpush1.msra.mxu0 0.0
        %1608 = vmatprep.subr.mxu0 0.0
        %1609 = vmatpush1.msra.mxu0 0.0
        %1610 = vmatprep.subr.mxu0 0.0
        %1611 = vmatpush1.msra.mxu0 0.0
        %1612 = vmatprep.subr.mxu0 0.0
        %1613 = vmatpush1.msra.mxu0 0.0
        %1614 = vmatprep.subr.mxu0 0.0
        %1615 = vmatpush1.msra.mxu0 0.0
        %1616 = vmatprep.subr.mxu0 0.0
        %1617 = vmatpush1.msra.mxu0 0.0
        %1618 = vmatprep.mubr.f32.mxu0 0.0
        %1619 = vmatmul.mubr.f32.gmra.mrb[0].mxu0 %v929
        %v1620 = vpop.f32.mrb[0].mxu0
        %v1621 = vadd.f32 %v1103, %v1620
        %v1622 = vpop.f32.mrb[0].mxu0
        %v1623 = vadd.f32 %v1107, %v1622
        %1624 = vmatprep.mubr.f32.mxu0 0.0
        %1625 = vmatmul.mubr.f32.gmra.mrb[0].mxu0 %v930
        %v1626 = vpop.f32.mrb[0].mxu0
        %v1627 = vadd.f32 %v1103, %v1626
        %v1628 = vpop.f32.mrb[0].mxu0
        %v1629 = vadd.f32 %v1107, %v1628
        %1630 = vmatprep.mubr.f32.mxu0 0.0
        %1631 = vmatmul.mubr.f32.gmra.mrb[0].mxu0 %v931
        %v1632 = vpop.f32.mrb[0].mxu0
        %v1633 = vadd.f32 %v1103, %v1632
        %v1634 = vpop.f32.mrb[0].mxu0
        %v1635 = vadd.f32 %v1107, %v1634
        %1636 = vmatprep.mubr.f32.mxu0 0.0
        %1637 = vmatmul.mubr.f32.gmra.mrb[0].mxu0 %v932
        %v1638 = vpop.f32.mrb[0].mxu0
        %v1639 = vadd.f32 %v1103, %v1638
        %v1640 = vpop.f32.mrb[0].mxu0
        %v1641 = vadd.f32 %v1107, %v1640
        %1642 = vmatprep.mubr.f32.mxu0 0.0
        %1643 = vmatmul.mubr.f32.gmra.mrb[0].mxu0 %v933
        %v1644 = vpop.f32.mrb[0].mxu0
        %v1645 = vadd.f32 %v1103, %v1644
        %v1646 = vpop.f32.mrb[0].mxu0
        %v1647 = vadd.f32 %v1107, %v1646
        %1648 = vmatprep.mubr.f32.mxu0 0.0
        %1649 = vmatmul.mubr.f32.gmra.mrb[0].mxu0 %v934
        %v1650 = vpop.f32.mrb[0].mxu0
        %v1651 = vadd.f32 %v1103, %v1650
        %v1652 = vpop.f32.mrb[0].mxu0
        %v1653 = vadd.f32 %v1107, %v1652
        %1654 = vmatprep.mubr.f32.mxu0 0.0
        %1655 = vmatmul.mubr.f32.gmra.mrb[0].mxu0 %v935
        %v1656 = vpop.f32.mrb[0].mxu0
        %v1657 = vadd.f32 %v1103, %v1656
        %v1658 = vpop.f32.mrb[0].mxu0
        %v1659 = vadd.f32 %v1107, %v1658
        %1660 = vmatprep.mubr.f32.mxu0 0.0
        %1661 = vmatmul.mubr.f32.gmra.mrb[0].mxu0 %v936
        %v1662 = vpop.f32.mrb[0].mxu0
        %v1663 = vadd.f32 %v1103, %v1662
        %v1664 = vpop.f32.mrb[0].mxu0
        %v1665 = vadd.f32 %v1107, %v1664
        %1666 = vmatprep.mubr.f32.mxu0 0.0
        %1667 = vmatmul.mubr.f32.gmra.mrb[0].mxu0 %v937
        %v1668 = vpop.f32.mrb[0].mxu0
        %v1669 = vadd.f32 %v1103, %v1668
        %v1670 = vpop.f32.mrb[0].mxu0
        %v1671 = vadd.f32 %v1107, %v1670
        %1672 = vmatprep.mubr.f32.mxu0 0.0
        %1673 = vmatmul.mubr.f32.gmra.mrb[0].mxu0 %v938
        %v1674 = vpop.f32.mrb[0].mxu0
        %v1675 = vadd.f32 %v1103, %v1674
        %v1676 = vpop.f32.mrb[0].mxu0
        %v1677 = vadd.f32 %v1107, %v1676
        %1678 = vmatprep.mubr.f32.mxu0 0.0
        %1679 = vmatmul.mubr.f32.gmra.mrb[0].mxu0 %v939
        %v1680 = vpop.f32.mrb[0].mxu0
        %v1681 = vadd.f32 %v1103, %v1680
        %v1682 = vpop.f32.mrb[0].mxu0
        %v1683 = vadd.f32 %v1107, %v1682
        %1684 = vmatprep.mubr.f32.mxu0 0.0
        %1685 = vmatmul.mubr.f32.gmra.mrb[0].mxu0 %v940
        %v1686 = vpop.f32.mrb[0].mxu0
        %v1687 = vadd.f32 %v1103, %v1686
        %v1688 = vpop.f32.mrb[0].mxu0
        %v1689 = vadd.f32 %v1107, %v1688
        %1690 = vmatprep.mubr.f32.mxu0 0.0
        %1691 = vmatmul.mubr.f32.gmra.mrb[0].mxu0 %v941
        %v1692 = vpop.f32.mrb[0].mxu0
        %v1693 = vadd.f32 %v1103, %v1692
        %v1694 = vpop.f32.mrb[0].mxu0
        %v1695 = vadd.f32 %v1107, %v1694
        %1696 = vmatprep.mubr.f32.mxu0 0.0
        %1697 = vmatmul.mubr.f32.gmra.mrb[0].mxu0 %v942
        %v1698 = vpop.f32.mrb[0].mxu0
        %v1699 = vadd.f32 %v1103, %v1698
        %v1700 = vpop.f32.mrb[0].mxu0
        %v1701 = vadd.f32 %v1107, %v1700
        %1702 = vmatprep.mubr.f32.mxu0 0.0
        %1703 = vmatmul.mubr.f32.gmra.mrb[0].mxu0 %v943
        %v1704 = vpop.f32.mrb[0].mxu0
        %v1705 = vadd.f32 %v1103, %v1704
        %v1706 = vpop.f32.mrb[0].mxu0
        %v1707 = vadd.f32 %v1107, %v1706
        %1708 = vmatprep.mubr.f32.mxu0 0.0
        %1709 = vmatmul.mubr.f32.gmra.mrb[0].mxu0 %v944
        %v1710 = vpop.f32.mrb[0].mxu0
        %v1711 = vadd.f32 %v1103, %v1710
        %v1712 = vpop.f32.mrb[0].mxu0
        %v1713 = vadd.f32 %v1107, %v1712
        %1714 = vmatprep.mubr.f32.mxu0 0.0
        %1715 = vmatmul.mubr.f32.gmra.mrb[0].mxu0 %v945
        %v1716 = vpop.f32.mrb[0].mxu0
        %v1717 = vadd.f32 %v1103, %v1716
        %v1718 = vpop.f32.mrb[0].mxu0
        %v1719 = vadd.f32 %v1107, %v1718
        %1720 = vmatprep.mubr.f32.mxu0 0.0
        %1721 = vmatmul.mubr.f32.gmra.mrb[0].mxu0 %v946
        %v1722 = vpop.f32.mrb[0].mxu0
        %v1723 = vadd.f32 %v1103, %v1722
        %v1724 = vpop.f32.mrb[0].mxu0
        %v1725 = vadd.f32 %v1107, %v1724
        %1726 = vmatprep.mubr.f32.mxu0 0.0
        %1727 = vmatmul.mubr.f32.gmra.mrb[0].mxu0 %v947
        %v1728 = vpop.f32.mrb[0].mxu0
        %v1729 = vadd.f32 %v1103, %v1728
        %v1730 = vpop.f32.mrb[0].mxu0
        %v1731 = vadd.f32 %v1107, %v1730
        %1732 = vmatprep.mubr.f32.mxu0 0.0
        %1733 = vmatmul.mubr.f32.gmra.mrb[0].mxu0 %v948
        %v1734 = vpop.f32.mrb[0].mxu0
        %v1735 = vadd.f32 %v1103, %v1734
        %v1736 = vpop.f32.mrb[0].mxu0
        %v1737 = vadd.f32 %v1107, %v1736
        %1738 = vmatprep.mubr.f32.mxu0 0.0
        %1739 = vmatmul.mubr.f32.gmra.mrb[0].mxu0 %v949
        %v1740 = vpop.f32.mrb[0].mxu0
        %v1741 = vadd.f32 %v1103, %v1740
        %v1742 = vpop.f32.mrb[0].mxu0
        %v1743 = vadd.f32 %v1107, %v1742
        %1744 = vmatprep.mubr.f32.mxu0 0.0
        %1745 = vmatmul.mubr.f32.gmra.mrb[0].mxu0 %v950
        %v1746 = vpop.f32.mrb[0].mxu0
        %v1747 = vadd.f32 %v1103, %v1746
        %v1748 = vpop.f32.mrb[0].mxu0
        %v1749 = vadd.f32 %v1107, %v1748
        %1750 = vmatprep.mubr.f32.mxu0 0.0
        %1751 = vmatmul.mubr.f32.gmra.mrb[0].mxu0 %v951
        %v1752 = vpop.f32.mrb[0].mxu0
        %v1753 = vadd.f32 %v1103, %v1752
        %v1754 = vpop.f32.mrb[0].mxu0
        %v1755 = vadd.f32 %v1107, %v1754
        %1756 = vmatprep.mubr.f32.mxu0 0.0
        %1757 = vmatmul.mubr.f32.gmra.mrb[0].mxu0 %v952
        %v1758 = vpop.f32.mrb[0].mxu0
        %v1759 = vadd.f32 %v1103, %v1758
        %v1760 = vpop.f32.mrb[0].mxu0
        %v1761 = vadd.f32 %v1107, %v1760
        %1762 = vmatprep.mubr.f32.mxu0 0.0
        %1763 = vmatmul.mubr.f32.gmra.mrb[0].mxu0 %v953
        %v1764 = vpop.f32.mrb[0].mxu0
        %v1765 = vadd.f32 %v1103, %v1764
        %v1766 = vpop.f32.mrb[0].mxu0
        %v1767 = vadd.f32 %v1107, %v1766
        %1768 = vdwg.mxu0
        %1769 = vmatprep.subr.mxu0 %v961
        %1770 = vmatpush1.msra.mxu0 %v960
        %1771 = vmatprep.subr.mxu0 %v969
        %1772 = vmatpush1.msra.mxu0 %v968
        %1773 = vmatprep.subr.mxu0 %v977
        %1774 = vmatpush1.msra.mxu0 %v976
        %1775 = vmatprep.subr.mxu0 %v985
        %1776 = vmatpush1.msra.mxu0 %v984
        %1777 = vmatprep.subr.mxu0 %v993
        %1778 = vmatpush1.msra.mxu0 %v992
        %1779 = vmatprep.subr.mxu0 %v1001
        %1780 = vmatpush1.msra.mxu0 %v1000
        %1781 = vmatprep.subr.mxu0 %v1009
        %1782 = vmatpush1.msra.mxu0 %v1008
        %1783 = vmatprep.subr.mxu0 %v1017
        %1784 = vmatpush1.msra.mxu0 %v1016
        %1785 = vmatprep.subr.mxu0 %v1025
        %1786 = vmatpush1.msra.mxu0 %v1024
        %1787 = vmatprep.subr.mxu0 %v1033
        %1788 = vmatpush1.msra.mxu0 %v1032
        %1789 = vmatprep.subr.mxu0 %v1041
        %1790 = vmatpush1.msra.mxu0 %v1040
        %1791 = vmatprep.subr.mxu0 %v1049
        %1792 = vmatpush1.msra.mxu0 %v1048
        %1793 = vmatprep.subr.mxu0 %v1057
        %1794 = vmatpush1.msra.mxu0 %v1056
        %1795 = vmatprep.subr.mxu0 %v1065
        %1796 = vmatpush1.msra.mxu0 %v1064
        %1797 = vmatprep.subr.mxu0 %v1073
        %1798 = vmatpush1.msra.mxu0 %v1072
        %1799 = vmatprep.subr.mxu0 %v1081
        %1800 = vmatpush1.msra.mxu0 %v1080
        %1801 = vmatprep.subr.mxu0 0.0
        %1802 = vmatpush1.msra.mxu0 0.0
        %1803 = vmatprep.subr.mxu0 0.0
        %1804 = vmatpush1.msra.mxu0 0.0
        %1805 = vmatprep.subr.mxu0 0.0
        %1806 = vmatpush1.msra.mxu0 0.0
        %1807 = vmatprep.subr.mxu0 0.0
        %1808 = vmatpush1.msra.mxu0 0.0
        %1809 = vmatprep.subr.mxu0 0.0
        %1810 = vmatpush1.msra.mxu0 0.0
        %1811 = vmatprep.subr.mxu0 0.0
        %1812 = vmatpush1.msra.mxu0 0.0
        %1813 = vmatprep.subr.mxu0 0.0
        %1814 = vmatpush1.msra.mxu0 0.0
        %1815 = vmatprep.subr.mxu0 0.0
        %1816 = vmatpush1.msra.mxu0 0.0
        %1817 = vmatprep.subr.mxu0 0.0
        %1818 = vmatpush1.msra.mxu0 0.0
        %1819 = vmatprep.subr.mxu0 0.0
        %1820 = vmatpush1.msra.mxu0 0.0
        %1821 = vmatprep.subr.mxu0 0.0
        %1822 = vmatpush1.msra.mxu0 0.0
        %1823 = vmatprep.subr.mxu0 0.0
        %1824 = vmatpush1.msra.mxu0 0.0
        %1825 = vmatprep.subr.mxu0 0.0
        %1826 = vmatpush1.msra.mxu0 0.0
        %1827 = vmatprep.subr.mxu0 0.0
        %1828 = vmatpush1.msra.mxu0 0.0
        %1829 = vmatprep.subr.mxu0 0.0
        %1830 = vmatpush1.msra.mxu0 0.0
        %1831 = vmatprep.subr.mxu0 0.0
        %1832 = vmatpush1.msra.mxu0 0.0
        %1833 = vmatprep.mubr.f32.mxu0 0.0
        %1834 = vmatmul.mubr.f32.gmra.mrb[0].mxu0 %v929
        %v1835 = vpop.f32.mrb[0].mxu0
        %v1836 = vadd.f32 %v1111, %v1835
        %v1837 = vpop.f32.mrb[0].mxu0
        %v1838 = vadd.f32 %v1115, %v1837
        %1839 = vmatprep.mubr.f32.mxu0 0.0
        %1840 = vmatmul.mubr.f32.gmra.mrb[0].mxu0 %v930
        %v1841 = vpop.f32.mrb[0].mxu0
        %v1842 = vadd.f32 %v1111, %v1841
        %v1843 = vpop.f32.mrb[0].mxu0
        %v1844 = vadd.f32 %v1115, %v1843
        %1845 = vmatprep.mubr.f32.mxu0 0.0
        %1846 = vmatmul.mubr.f32.gmra.mrb[0].mxu0 %v931
        %v1847 = vpop.f32.mrb[0].mxu0
        %v1848 = vadd.f32 %v1111, %v1847
        %v1849 = vpop.f32.mrb[0].mxu0
        %v1850 = vadd.f32 %v1115, %v1849
        %1851 = vmatprep.mubr.f32.mxu0 0.0
        %1852 = vmatmul.mubr.f32.gmra.mrb[0].mxu0 %v932
        %v1853 = vpop.f32.mrb[0].mxu0
        %v1854 = vadd.f32 %v1111, %v1853
        %v1855 = vpop.f32.mrb[0].mxu0
        %v1856 = vadd.f32 %v1115, %v1855
        %1857 = vmatprep.mubr.f32.mxu0 0.0
        %1858 = vmatmul.mubr.f32.gmra.mrb[0].mxu0 %v933
        %v1859 = vpop.f32.mrb[0].mxu0
        %v1860 = vadd.f32 %v1111, %v1859
        %v1861 = vpop.f32.mrb[0].mxu0
        %v1862 = vadd.f32 %v1115, %v1861
        %1863 = vmatprep.mubr.f32.mxu0 0.0
        %1864 = vmatmul.mubr.f32.gmra.mrb[0].mxu0 %v934
        %v1865 = vpop.f32.mrb[0].mxu0
        %v1866 = vadd.f32 %v1111, %v1865
        %v1867 = vpop.f32.mrb[0].mxu0
        %v1868 = vadd.f32 %v1115, %v1867
        %1869 = vmatprep.mubr.f32.mxu0 0.0
        %1870 = vmatmul.mubr.f32.gmra.mrb[0].mxu0 %v935
        %v1871 = vpop.f32.mrb[0].mxu0
        %v1872 = vadd.f32 %v1111, %v1871
        %v1873 = vpop.f32.mrb[0].mxu0
        %v1874 = vadd.f32 %v1115, %v1873
        %1875 = vmatprep.mubr.f32.mxu0 0.0
        %1876 = vmatmul.mubr.f32.gmra.mrb[0].mxu0 %v936
        %v1877 = vpop.f32.mrb[0].mxu0
        %v1878 = vadd.f32 %v1111, %v1877
        %v1879 = vpop.f32.mrb[0].mxu0
        %v1880 = vadd.f32 %v1115, %v1879
        %1881 = vmatprep.mubr.f32.mxu0 0.0
        %1882 = vmatmul.mubr.f32.gmra.mrb[0].mxu0 %v937
        %v1883 = vpop.f32.mrb[0].mxu0
        %v1884 = vadd.f32 %v1111, %v1883
        %v1885 = vpop.f32.mrb[0].mxu0
        %v1886 = vadd.f32 %v1115, %v1885
        %1887 = vmatprep.mubr.f32.mxu0 0.0
        %1888 = vmatmul.mubr.f32.gmra.mrb[0].mxu0 %v938
        %v1889 = vpop.f32.mrb[0].mxu0
        %v1890 = vadd.f32 %v1111, %v1889
        %v1891 = vpop.f32.mrb[0].mxu0
        %v1892 = vadd.f32 %v1115, %v1891
        %1893 = vmatprep.mubr.f32.mxu0 0.0
        %1894 = vmatmul.mubr.f32.gmra.mrb[0].mxu0 %v939
        %v1895 = vpop.f32.mrb[0].mxu0
        %v1896 = vadd.f32 %v1111, %v1895
        %v1897 = vpop.f32.mrb[0].mxu0
        %v1898 = vadd.f32 %v1115, %v1897
        %1899 = vmatprep.mubr.f32.mxu0 0.0
        %1900 = vmatmul.mubr.f32.gmra.mrb[0].mxu0 %v940
        %v1901 = vpop.f32.mrb[0].mxu0
        %v1902 = vadd.f32 %v1111, %v1901
        %v1903 = vpop.f32.mrb[0].mxu0
        %v1904 = vadd.f32 %v1115, %v1903
        %1905 = vmatprep.mubr.f32.mxu0 0.0
        %1906 = vmatmul.mubr.f32.gmra.mrb[0].mxu0 %v941
        %v1907 = vpop.f32.mrb[0].mxu0
        %v1908 = vadd.f32 %v1111, %v1907
        %v1909 = vpop.f32.mrb[0].mxu0
        %v1910 = vadd.f32 %v1115, %v1909
        %1911 = vmatprep.mubr.f32.mxu0 0.0
        %1912 = vmatmul.mubr.f32.gmra.mrb[0].mxu0 %v942
        %v1913 = vpop.f32.mrb[0].mxu0
        %v1914 = vadd.f32 %v1111, %v1913
        %v1915 = vpop.f32.mrb[0].mxu0
        %v1916 = vadd.f32 %v1115, %v1915
        %1917 = vmatprep.mubr.f32.mxu0 0.0
        %1918 = vmatmul.mubr.f32.gmra.mrb[0].mxu0 %v943
        %v1919 = vpop.f32.mrb[0].mxu0
        %v1920 = vadd.f32 %v1111, %v1919
        %v1921 = vpop.f32.mrb[0].mxu0
        %v1922 = vadd.f32 %v1115, %v1921
        %1923 = vmatprep.mubr.f32.mxu0 0.0
        %1924 = vmatmul.mubr.f32.gmra.mrb[0].mxu0 %v944
        %v1925 = vpop.f32.mrb[0].mxu0
        %v1926 = vadd.f32 %v1111, %v1925
        %v1927 = vpop.f32.mrb[0].mxu0
        %v1928 = vadd.f32 %v1115, %v1927
        %1929 = vmatprep.mubr.f32.mxu0 0.0
        %1930 = vmatmul.mubr.f32.gmra.mrb[0].mxu0 %v945
        %v1931 = vpop.f32.mrb[0].mxu0
        %v1932 = vadd.f32 %v1111, %v1931
        %v1933 = vpop.f32.mrb[0].mxu0
        %v1934 = vadd.f32 %v1115, %v1933
        %1935 = vmatprep.mubr.f32.mxu0 0.0
        %1936 = vmatmul.mubr.f32.gmra.mrb[0].mxu0 %v946
        %v1937 = vpop.f32.mrb[0].mxu0
        %v1938 = vadd.f32 %v1111, %v1937
        %v1939 = vpop.f32.mrb[0].mxu0
        %v1940 = vadd.f32 %v1115, %v1939
        %1941 = vmatprep.mubr.f32.mxu0 0.0
        %1942 = vmatmul.mubr.f32.gmra.mrb[0].mxu0 %v947
        %v1943 = vpop.f32.mrb[0].mxu0
        %v1944 = vadd.f32 %v1111, %v1943
        %v1945 = vpop.f32.mrb[0].mxu0
        %v1946 = vadd.f32 %v1115, %v1945
        %1947 = vmatprep.mubr.f32.mxu0 0.0
        %1948 = vmatmul.mubr.f32.gmra.mrb[0].mxu0 %v948
        %v1949 = vpop.f32.mrb[0].mxu0
        %v1950 = vadd.f32 %v1111, %v1949
        %v1951 = vpop.f32.mrb[0].mxu0
        %v1952 = vadd.f32 %v1115, %v1951
        %1953 = vmatprep.mubr.f32.mxu0 0.0
        %1954 = vmatmul.mubr.f32.gmra.mrb[0].mxu0 %v949
        %v1955 = vpop.f32.mrb[0].mxu0
        %v1956 = vadd.f32 %v1111, %v1955
        %v1957 = vpop.f32.mrb[0].mxu0
        %v1958 = vadd.f32 %v1115, %v1957
        %1959 = vmatprep.mubr.f32.mxu0 0.0
        %1960 = vmatmul.mubr.f32.gmra.mrb[0].mxu0 %v950
        %v1961 = vpop.f32.mrb[0].mxu0
        %v1962 = vadd.f32 %v1111, %v1961
        %v1963 = vpop.f32.mrb[0].mxu0
        %v1964 = vadd.f32 %v1115, %v1963
        %1965 = vmatprep.mubr.f32.mxu0 0.0
        %1966 = vmatmul.mubr.f32.gmra.mrb[0].mxu0 %v951
        %v1967 = vpop.f32.mrb[0].mxu0
        %v1968 = vadd.f32 %v1111, %v1967
        %v1969 = vpop.f32.mrb[0].mxu0
        %v1970 = vadd.f32 %v1115, %v1969
        %1971 = vmatprep.mubr.f32.mxu0 0.0
        %1972 = vmatmul.mubr.f32.gmra.mrb[0].mxu0 %v952
        %v1973 = vpop.f32.mrb[0].mxu0
        %v1974 = vadd.f32 %v1111, %v1973
        %v1975 = vpop.f32.mrb[0].mxu0
        %v1976 = vadd.f32 %v1115, %v1975
        %1977 = vmatprep.mubr.f32.mxu0 0.0
        %1978 = vmatmul.mubr.f32.gmra.mrb[0].mxu0 %v953
        %v1979 = vpop.f32.mrb[0].mxu0
        %v1980 = vadd.f32 %v1111, %v1979
        %v1981 = vpop.f32.mrb[0].mxu0
        %v1982 = vadd.f32 %v1115, %v1981
        %1983 = vdwg.mxu0
        %v1984 = vtanh.pop %v1191
        %v1985 = vtanh.pop %v1193
        %v1986 = vtanh.pop %v1406
        %v1987 = vtanh.pop %v1408
        %v1988 = vtanh.pop %v1621
        %v1989 = vtanh.pop %v1623
        %v1990 = vtanh.pop %v1836
        %v1991 = vtanh.pop %v1838
        %v1992 = vtanh.pop %v1197
        %v1993 = vtanh.pop %v1199
        %v1994 = vtanh.pop %v1412
        %v1995 = vtanh.pop %v1414
        %v1996 = vtanh.pop %v1627
        %v1997 = vtanh.pop %v1629
        %v1998 = vtanh.pop %v1842
        %v1999 = vtanh.pop %v1844
        %v2000 = vtanh.pop %v1203
        %v2001 = vtanh.pop %v1205
        %v2002 = vtanh.pop %v1418
        %v2003 = vtanh.pop %v1420
        %v2004 = vtanh.pop %v1633
        %v2005 = vtanh.pop %v1635
        %v2006 = vtanh.pop %v1848
        %v2007 = vtanh.pop %v1850
        %v2008 = vtanh.pop %v1209
        %v2009 = vtanh.pop %v1211
        %v2010 = vtanh.pop %v1424
        %v2011 = vtanh.pop %v1426
        %v2012 = vtanh.pop %v1639
        %v2013 = vtanh.pop %v1641
        %v2014 = vtanh.pop %v1854
        %v2015 = vtanh.pop %v1856
        %v2016 = vtanh.pop %v1215
        %v2017 = vtanh.pop %v1217
        %v2018 = vtanh.pop %v1430
        %v2019 = vtanh.pop %v1432
        %v2020 = vtanh.pop %v1645
        %v2021 = vtanh.pop %v1647
        %v2022 = vtanh.pop %v1860
        %v2023 = vtanh.pop %v1862
        %v2024 = vtanh.pop %v1221
        %v2025 = vtanh.pop %v1223
        %v2026 = vtanh.pop %v1436
        %v2027 = vtanh.pop %v1438
        %v2028 = vtanh.pop %v1651
        %v2029 = vtanh.pop %v1653
        %v2030 = vtanh.pop %v1866
        %v2031 = vtanh.pop %v1868
        %v2032 = vtanh.pop %v1227
        %v2033 = vtanh.pop %v1229
        %v2034 = vtanh.pop %v1442
        %v2035 = vtanh.pop %v1444
        %v2036 = vtanh.pop %v1657
        %v2037 = vtanh.pop %v1659
        %v2038 = vtanh.pop %v1872
        %v2039 = vtanh.pop %v1874
        %v2040 = vtanh.pop %v1233
        %v2041 = vtanh.pop %v1235
        %v2042 = vtanh.pop %v1448
        %v2043 = vtanh.pop %v1450
        %v2044 = vtanh.pop %v1663
        %v2045 = vtanh.pop %v1665
        %v2046 = vtanh.pop %v1878
        %v2047 = vtanh.pop %v1880
        %v2048 = vtanh.pop %v1239
        %v2049 = vtanh.pop %v1241
        %v2050 = vtanh.pop %v1454
        %v2051 = vtanh.pop %v1456
        %v2052 = vtanh.pop %v1669
        %v2053 = vtanh.pop %v1671
        %v2054 = vtanh.pop %v1884
        %v2055 = vtanh.pop %v1886
        %v2056 = vtanh.pop %v1245
        %v2057 = vtanh.pop %v1247
        %v2058 = vtanh.pop %v1460
        %v2059 = vtanh.pop %v1462
        %v2060 = vtanh.pop %v1675
        %v2061 = vtanh.pop %v1677
        %v2062 = vtanh.pop %v1890
        %v2063 = vtanh.pop %v1892
        %v2064 = vtanh.pop %v1251
        %v2065 = vtanh.pop %v1253
        %v2066 = vtanh.pop %v1466
        %v2067 = vtanh.pop %v1468
        %v2068 = vtanh.pop %v1681
        %v2069 = vtanh.pop %v1683
        %v2070 = vtanh.pop %v1896
        %v2071 = vtanh.pop %v1898
        %v2072 = vtanh.pop %v1257
        %v2073 = vtanh.pop %v1259
        %v2074 = vtanh.pop %v1472
        %v2075 = vtanh.pop %v1474
        %v2076 = vtanh.pop %v1687
        %v2077 = vtanh.pop %v1689
        %v2078 = vtanh.pop %v1902
        %v2079 = vtanh.pop %v1904
        %v2080 = vtanh.pop %v1263
        %v2081 = vtanh.pop %v1265
        %v2082 = vtanh.pop %v1478
        %v2083 = vtanh.pop %v1480
        %v2084 = vtanh.pop %v1693
        %v2085 = vtanh.pop %v1695
        %v2086 = vtanh.pop %v1908
        %v2087 = vtanh.pop %v1910
        %v2088 = vtanh.pop %v1269
        %v2089 = vtanh.pop %v1271
        %v2090 = vtanh.pop %v1484
        %v2091 = vtanh.pop %v1486
        %v2092 = vtanh.pop %v1699
        %v2093 = vtanh.pop %v1701
        %v2094 = vtanh.pop %v1914
        %v2095 = vtanh.pop %v1916
        %v2096 = vtanh.pop %v1275
        %v2097 = vtanh.pop %v1277
        %v2098 = vtanh.pop %v1490
        %v2099 = vtanh.pop %v1492
        %v2100 = vtanh.pop %v1705
        %v2101 = vtanh.pop %v1707
        %v2102 = vtanh.pop %v1920
        %v2103 = vtanh.pop %v1922
        %v2104 = vtanh.pop %v1281
        %v2105 = vtanh.pop %v1283
        %v2106 = vtanh.pop %v1496
        %v2107 = vtanh.pop %v1498
        %v2108 = vtanh.pop %v1711
        %v2109 = vtanh.pop %v1713
        %v2110 = vtanh.pop %v1926
        %v2111 = vtanh.pop %v1928
        %v2112 = vtanh.pop %v1287
        %v2113 = vtanh.pop %v1289
        %v2114 = vtanh.pop %v1502
        %v2115 = vtanh.pop %v1504
        %v2116 = vtanh.pop %v1717
        %v2117 = vtanh.pop %v1719
        %v2118 = vtanh.pop %v1932
        %v2119 = vtanh.pop %v1934
        %v2120 = vtanh.pop %v1293
        %v2121 = vtanh.pop %v1295
        %v2122 = vtanh.pop %v1508
        %v2123 = vtanh.pop %v1510
        %v2124 = vtanh.pop %v1723
        %v2125 = vtanh.pop %v1725
        %v2126 = vtanh.pop %v1938
        %v2127 = vtanh.pop %v1940
        %v2128 = vtanh.pop %v1299
        %v2129 = vtanh.pop %v1301
        %v2130 = vtanh.pop %v1514
        %v2131 = vtanh.pop %v1516
        %v2132 = vtanh.pop %v1729
        %v2133 = vtanh.pop %v1731
        %v2134 = vtanh.pop %v1944
        %v2135 = vtanh.pop %v1946
        %v2136 = vtanh.pop %v1305
        %v2137 = vtanh.pop %v1307
        %v2138 = vtanh.pop %v1520
        %v2139 = vtanh.pop %v1522
        %v2140 = vtanh.pop %v1735
        %v2141 = vtanh.pop %v1737
        %v2142 = vtanh.pop %v1950
        %v2143 = vtanh.pop %v1952
        %v2144 = vtanh.pop %v1311
        %v2145 = vtanh.pop %v1313
        %v2146 = vtanh.pop %v1526
        %v2147 = vtanh.pop %v1528
        %v2148 = vtanh.pop %v1741
        %v2149 = vtanh.pop %v1743
        %v2150 = vtanh.pop %v1956
        %v2151 = vtanh.pop %v1958
        %v2152 = vtanh.pop %v1317
        %v2153 = vtanh.pop %v1319
        %v2154 = vtanh.pop %v1532
        %v2155 = vtanh.pop %v1534
        %v2156 = vtanh.pop %v1747
        %v2157 = vtanh.pop %v1749
        %v2158 = vtanh.pop %v1962
        %v2159 = vtanh.pop %v1964
        %v2160 = vtanh.pop %v1323
        %v2161 = vtanh.pop %v1325
        %v2162 = vtanh.pop %v1538
        %v2163 = vtanh.pop %v1540
        %v2164 = vtanh.pop %v1753
        %v2165 = vtanh.pop %v1755
        %v2166 = vtanh.pop %v1968
        %v2167 = vtanh.pop %v1970
        %v2168 = vtanh.pop %v1329
        %v2169 = vtanh.pop %v1331
        %v2170 = vtanh.pop %v1544
        %v2171 = vtanh.pop %v1546
        %v2172 = vtanh.pop %v1759
        %v2173 = vtanh.pop %v1761
        %v2174 = vtanh.pop %v1974
        %v2175 = vtanh.pop %v1976
        %v2176 = vtanh.pop %v1335
        %v2177 = vtanh.pop %v1337
        %v2178 = vtanh.pop %v1550
        %v2179 = vtanh.pop %v1552
        %v2180 = vtanh.pop %v1765
        %v2181 = vtanh.pop %v1767
        %v2182 = vtanh.pop %v1980
        %v2183 = vtanh.pop %v1982
        %v2184 = vmax.f32 %v1984, %v1992
        %v2185 = vmax.f32 %v2184, %v2000
        %v2186 = vmax.f32 %v2185, %v2008
        %v2187 = vmax.f32 %v2186, %v2016
        %v2188 = vmax.f32 %v2187, %v2024
        %v2189 = vmax.f32 %v2188, %v2032
        %v2190 = vmax.f32 %v2189, %v2040
        %v2191 = vmax.f32 %v2190, %v2048
        %v2192 = vmax.f32 %v2191, %v2056
        %v2193 = vmax.f32 %v2192, %v2064
        %v2194 = vmax.f32 %v2193, %v2072
        %v2195 = vmax.f32 %v2194, %v2080
        %v2196 = vmax.f32 %v2195, %v2088
        %v2197 = vmax.f32 %v2196, %v2096
        %v2198 = vmax.f32 %v2197, %v2104
        %v2199 = vmax.f32 %v2198, %v2112
        %v2200 = vmax.f32 %v2199, %v2120
        %v2201 = vmax.f32 %v2200, %v2128
        %v2202 = vmax.f32 %v2201, %v2136
        %v2203 = vmax.f32 %v2202, %v2144
        %v2204 = vmax.f32 %v2203, %v2152
        %v2205 = vmax.f32 %v2204, %v2160
        %v2206 = vmax.f32 %v2205, %v2168
        %v2207 = vmax.f32 %v2206, %v2176
        %v2208 = vrot.slane %v2207, 4
        %v2209 = vmax.f32 %v2207, %v2208
        %v2210 = vrot.slane %v2209, 2
        %v2211 = vmax.f32 %v2209, %v2210
        %v2212 = vrot.slane %v2211, 1
        %v2213 = vmax.f32 %v2211, %v2212
        %v2214 = vmax.f32 %v1985, %v1993
        %v2215 = vmax.f32 %v2214, %v2001
        %v2216 = vmax.f32 %v2215, %v2009
        %v2217 = vmax.f32 %v2216, %v2017
        %v2218 = vmax.f32 %v2217, %v2025
        %v2219 = vmax.f32 %v2218, %v2033
        %v2220 = vmax.f32 %v2219, %v2041
        %v2221 = vmax.f32 %v2220, %v2049
        %v2222 = vmax.f32 %v2221, %v2057
        %v2223 = vmax.f32 %v2222, %v2065
        %v2224 = vmax.f32 %v2223, %v2073
        %v2225 = vmax.f32 %v2224, %v2081
        %v2226 = vmax.f32 %v2225, %v2089
        %v2227 = vmax.f32 %v2226, %v2097
        %v2228 = vmax.f32 %v2227, %v2105
        %v2229 = vmax.f32 %v2228, %v2113
        %v2230 = vmax.f32 %v2229, %v2121
        %v2231 = vmax.f32 %v2230, %v2129
        %v2232 = vmax.f32 %v2231, %v2137
        %v2233 = vmax.f32 %v2232, %v2145
        %v2234 = vmax.f32 %v2233, %v2153
        %v2235 = vmax.f32 %v2234, %v2161
        %v2236 = vmax.f32 %v2235, %v2169
        %v2237 = vmax.f32 %v2236, %v2177
        %v2238 = vrot.slane %v2237, 4
        %v2239 = vmax.f32 %v2237, %v2238
        %v2240 = vrot.slane %v2239, 2
        %v2241 = vmax.f32 %v2239, %v2240
        %v2242 = vrot.slane %v2241, 1
        %v2243 = vmax.f32 %v2241, %v2242
        %v2244 = vmax.f32 %v1986, %v1994
        %v2245 = vmax.f32 %v2244, %v2002
        %v2246 = vmax.f32 %v2245, %v2010
        %v2247 = vmax.f32 %v2246, %v2018
        %v2248 = vmax.f32 %v2247, %v2026
        %v2249 = vmax.f32 %v2248, %v2034
        %v2250 = vmax.f32 %v2249, %v2042
        %v2251 = vmax.f32 %v2250, %v2050
        %v2252 = vmax.f32 %v2251, %v2058
        %v2253 = vmax.f32 %v2252, %v2066
        %v2254 = vmax.f32 %v2253, %v2074
        %v2255 = vmax.f32 %v2254, %v2082
        %v2256 = vmax.f32 %v2255, %v2090
        %v2257 = vmax.f32 %v2256, %v2098
        %v2258 = vmax.f32 %v2257, %v2106
        %v2259 = vmax.f32 %v2258, %v2114
        %v2260 = vmax.f32 %v2259, %v2122
        %v2261 = vmax.f32 %v2260, %v2130
        %v2262 = vmax.f32 %v2261, %v2138
        %v2263 = vmax.f32 %v2262, %v2146
        %v2264 = vmax.f32 %v2263, %v2154
        %v2265 = vmax.f32 %v2264, %v2162
        %v2266 = vmax.f32 %v2265, %v2170
        %v2267 = vmax.f32 %v2266, %v2178
        %v2268 = vrot.slane %v2267, 4
        %v2269 = vmax.f32 %v2267, %v2268
        %v2270 = vrot.slane %v2269, 2
        %v2271 = vmax.f32 %v2269, %v2270
        %v2272 = vrot.slane %v2271, 1
        %v2273 = vmax.f32 %v2271, %v2272
        %v2274 = vmax.f32 %v1987, %v1995
        %v2275 = vmax.f32 %v2274, %v2003
        %v2276 = vmax.f32 %v2275, %v2011
        %v2277 = vmax.f32 %v2276, %v2019
        %v2278 = vmax.f32 %v2277, %v2027
        %v2279 = vmax.f32 %v2278, %v2035
        %v2280 = vmax.f32 %v2279, %v2043
        %v2281 = vmax.f32 %v2280, %v2051
        %v2282 = vmax.f32 %v2281, %v2059
        %v2283 = vmax.f32 %v2282, %v2067
        %v2284 = vmax.f32 %v2283, %v2075
        %v2285 = vmax.f32 %v2284, %v2083
        %v2286 = vmax.f32 %v2285, %v2091
        %v2287 = vmax.f32 %v2286, %v2099
        %v2288 = vmax.f32 %v2287, %v2107
        %v2289 = vmax.f32 %v2288, %v2115
        %v2290 = vmax.f32 %v2289, %v2123
        %v2291 = vmax.f32 %v2290, %v2131
        %v2292 = vmax.f32 %v2291, %v2139
        %v2293 = vmax.f32 %v2292, %v2147
        %v2294 = vmax.f32 %v2293, %v2155
        %v2295 = vmax.f32 %v2294, %v2163
        %v2296 = vmax.f32 %v2295, %v2171
        %v2297 = vmax.f32 %v2296, %v2179
        %v2298 = vrot.slane %v2297, 4
        %v2299 = vmax.f32 %v2297, %v2298
        %v2300 = vrot.slane %v2299, 2
        %v2301 = vmax.f32 %v2299, %v2300
        %v2302 = vrot.slane %v2301, 1
        %v2303 = vmax.f32 %v2301, %v2302
        %v2304 = vmax.f32 %v1988, %v1996
        %v2305 = vmax.f32 %v2304, %v2004
        %v2306 = vmax.f32 %v2305, %v2012
        %v2307 = vmax.f32 %v2306, %v2020
        %v2308 = vmax.f32 %v2307, %v2028
        %v2309 = vmax.f32 %v2308, %v2036
        %v2310 = vmax.f32 %v2309, %v2044
        %v2311 = vmax.f32 %v2310, %v2052
        %v2312 = vmax.f32 %v2311, %v2060
        %v2313 = vmax.f32 %v2312, %v2068
        %v2314 = vmax.f32 %v2313, %v2076
        %v2315 = vmax.f32 %v2314, %v2084
        %v2316 = vmax.f32 %v2315, %v2092
        %v2317 = vmax.f32 %v2316, %v2100
        %v2318 = vmax.f32 %v2317, %v2108
        %v2319 = vmax.f32 %v2318, %v2116
        %v2320 = vmax.f32 %v2319, %v2124
        %v2321 = vmax.f32 %v2320, %v2132
        %v2322 = vmax.f32 %v2321, %v2140
        %v2323 = vmax.f32 %v2322, %v2148
        %v2324 = vmax.f32 %v2323, %v2156
        %v2325 = vmax.f32 %v2324, %v2164
        %v2326 = vmax.f32 %v2325, %v2172
        %v2327 = vmax.f32 %v2326, %v2180
        %v2328 = vrot.slane %v2327, 4
        %v2329 = vmax.f32 %v2327, %v2328
        %v2330 = vrot.slane %v2329, 2
        %v2331 = vmax.f32 %v2329, %v2330
        %v2332 = vrot.slane %v2331, 1
        %v2333 = vmax.f32 %v2331, %v2332
        %v2334 = vmax.f32 %v1989, %v1997
        %v2335 = vmax.f32 %v2334, %v2005
        %v2336 = vmax.f32 %v2335, %v2013
        %v2337 = vmax.f32 %v2336, %v2021
        %v2338 = vmax.f32 %v2337, %v2029
        %v2339 = vmax.f32 %v2338, %v2037
        %v2340 = vmax.f32 %v2339, %v2045
        %v2341 = vmax.f32 %v2340, %v2053
        %v2342 = vmax.f32 %v2341, %v2061
        %v2343 = vmax.f32 %v2342, %v2069
        %v2344 = vmax.f32 %v2343, %v2077
        %v2345 = vmax.f32 %v2344, %v2085
        %v2346 = vmax.f32 %v2345, %v2093
        %v2347 = vmax.f32 %v2346, %v2101
        %v2348 = vmax.f32 %v2347, %v2109
        %v2349 = vmax.f32 %v2348, %v2117
        %v2350 = vmax.f32 %v2349, %v2125
        %v2351 = vmax.f32 %v2350, %v2133
        %v2352 = vmax.f32 %v2351, %v2141
        %v2353 = vmax.f32 %v2352, %v2149
        %v2354 = vmax.f32 %v2353, %v2157
        %v2355 = vmax.f32 %v2354, %v2165
        %v2356 = vmax.f32 %v2355, %v2173
        %v2357 = vmax.f32 %v2356, %v2181
        %v2358 = vrot.slane %v2357, 4
        %v2359 = vmax.f32 %v2357, %v2358
        %v2360 = vrot.slane %v2359, 2
        %v2361 = vmax.f32 %v2359, %v2360
        %v2362 = vrot.slane %v2361, 1
        %v2363 = vmax.f32 %v2361, %v2362
        %v2364 = vmax.f32 %v1990, %v1998
        %v2365 = vmax.f32 %v2364, %v2006
        %v2366 = vmax.f32 %v2365, %v2014
        %v2367 = vmax.f32 %v2366, %v2022
        %v2368 = vmax.f32 %v2367, %v2030
        %v2369 = vmax.f32 %v2368, %v2038
        %v2370 = vmax.f32 %v2369, %v2046
        %v2371 = vmax.f32 %v2370, %v2054
        %v2372 = vmax.f32 %v2371, %v2062
        %v2373 = vmax.f32 %v2372, %v2070
        %v2374 = vmax.f32 %v2373, %v2078
        %v2375 = vmax.f32 %v2374, %v2086
        %v2376 = vmax.f32 %v2375, %v2094
        %v2377 = vmax.f32 %v2376, %v2102
        %v2378 = vmax.f32 %v2377, %v2110
        %v2379 = vmax.f32 %v2378, %v2118
        %v2380 = vmax.f32 %v2379, %v2126
        %v2381 = vmax.f32 %v2380, %v2134
        %v2382 = vmax.f32 %v2381, %v2142
        %v2383 = vmax.f32 %v2382, %v2150
        %v2384 = vmax.f32 %v2383, %v2158
        %v2385 = vmax.f32 %v2384, %v2166
        %v2386 = vmax.f32 %v2385, %v2174
        %v2387 = vmax.f32 %v2386, %v2182
        %v2388 = vrot.slane %v2387, 4
        %v2389 = vmax.f32 %v2387, %v2388
        %v2390 = vrot.slane %v2389, 2
        %v2391 = vmax.f32 %v2389, %v2390
        %v2392 = vrot.slane %v2391, 1
        %v2393 = vmax.f32 %v2391, %v2392
        %v2394 = vmax.f32 %v1991, %v1999
        %v2395 = vmax.f32 %v2394, %v2007
        %v2396 = vmax.f32 %v2395, %v2015
        %v2397 = vmax.f32 %v2396, %v2023
        %v2398 = vmax.f32 %v2397, %v2031
        %v2399 = vmax.f32 %v2398, %v2039
        %v2400 = vmax.f32 %v2399, %v2047
        %v2401 = vmax.f32 %v2400, %v2055
        %v2402 = vmax.f32 %v2401, %v2063
        %v2403 = vmax.f32 %v2402, %v2071
        %v2404 = vmax.f32 %v2403, %v2079
        %v2405 = vmax.f32 %v2404, %v2087
        %v2406 = vmax.f32 %v2405, %v2095
        %v2407 = vmax.f32 %v2406, %v2103
        %v2408 = vmax.f32 %v2407, %v2111
        %v2409 = vmax.f32 %v2408, %v2119
        %v2410 = vmax.f32 %v2409, %v2127
        %v2411 = vmax.f32 %v2410, %v2135
        %v2412 = vmax.f32 %v2411, %v2143
        %v2413 = vmax.f32 %v2412, %v2151
        %v2414 = vmax.f32 %v2413, %v2159
        %v2415 = vmax.f32 %v2414, %v2167
        %v2416 = vmax.f32 %v2415, %v2175
        %v2417 = vmax.f32 %v2416, %v2183
        %v2418 = vrot.slane %v2417, 4
        %v2419 = vmax.f32 %v2417, %v2418
        %v2420 = vrot.slane %v2419, 2
        %v2421 = vmax.f32 %v2419, %v2420
        %v2422 = vrot.slane %v2421, 1
        %v2423 = vmax.f32 %v2421, %v2422
        %p2424 = scmp.eq.s32.totalorder %s27, 0
        // Predicated region
        $region53: #{tpu_custom_call.1} parent=47 // pred_check
          %p2425 = pneg %p2424
        $region54: #{tpu_custom_call.1} parent=47 // pred_check_branch
          %2427 = sbr.rel (%p2425) target = $region56
        $region55: #{tpu_custom_call.1} parent=47 // pred_region
          %v2436 = vcombine.low %v2213, %v2243
          %v2437 = vcombine.low %v2273, %v2303
          %v2438 = vcombine.low %v2333, %v2363
          %v2439 = vcombine.low %v2393, %v2423
          %v2441 = vunpack.c.l.s4 1966171168
          %v2442 = vunpack.c.0.s8 %v2441
          %v2443 = vlaneseq
          %v2444 = vshrl.u32 %v2443, 7
          %v2445 = vsub.s32 %v2442, %v2444
          %v2446 = vrot.slane %v2436, %v2445
          %v2448 = vunpack.c.l.s4 1966171168
          %v2449 = vunpack.c.0.s8 %v2448
          %v2450 = vlaneseq
          %v2451 = vshrl.u32 %v2450, 7
          %v2452 = vsub.s32 %v2449, %v2451
          %v2453 = vrot.slane %v2437, %v2452
          %v2455 = vunpack.c.l.s4 1966171168
          %v2456 = vunpack.c.0.s8 %v2455
          %v2457 = vlaneseq
          %v2458 = vshrl.u32 %v2457, 7
          %v2459 = vsub.s32 %v2456, %v2458
          %v2460 = vrot.slane %v2438, %v2459
          %v2462 = vunpack.c.l.s4 1966171168
          %v2463 = vunpack.c.0.s8 %v2462
          %v2464 = vlaneseq
          %v2465 = vshrl.u32 %v2464, 7
          %v2466 = vsub.s32 %v2463, %v2465
          %v2467 = vrot.slane %v2439, %v2466
          %v2468 = vcombine.low %v2446, %v2453
          %v2469 = vcombine.low %v2460, %v2467
          %v2471 = vunpack.c.l.s4 1966171168
          %v2472 = vunpack.c.0.s8 %v2471
          %v2473 = vlaneseq
          %v2474 = vshrl.u32 %v2473, 7
          %v2475 = vsub.s32 %v2472, %v2474
          %v2476 = vrot.slane %v2468, %v2475
          %v2478 = vunpack.c.l.s4 1966171168
          %v2479 = vunpack.c.0.s8 %v2478
          %v2480 = vlaneseq
          %v2481 = vshrl.u32 %v2480, 7
          %v2482 = vsub.s32 %v2479, %v2481
          %v2483 = vrot.slane %v2469, %v2482
          %v2484 = vcombine.low %v2476, %v2483
          %2486 = vst [vmem:[%s309] sm:$0xff] %v2484
        $region56: #{tpu_custom_call.1} parent=47 // pred_fallthru
          _
        %p2487 = scmp.gt.s32.totalorder %s27, 0
        // Predicated region
        $region57: #{tpu_custom_call.1} parent=47 // pred_check
          %p2488 = pneg %p2487
        $region58: #{tpu_custom_call.1} parent=47 // pred_check_branch
          %2490 = sbr.rel (%p2488) target = $region60
        $region59: #{tpu_custom_call.1} parent=47 // pred_region
          %v2491 = vld [vmem:[%s309] sm:$0xff]
          %v2500 = vcombine.low %v2213, %v2243
          %v2501 = vcombine.low %v2273, %v2303
          %v2502 = vcombine.low %v2333, %v2363
          %v2503 = vcombine.low %v2393, %v2423
          %v2505 = vunpack.c.l.s4 1966171168
          %v2506 = vunpack.c.0.s8 %v2505
          %v2507 = vlaneseq
          %v2508 = vshrl.u32 %v2507, 7
          %v2509 = vsub.s32 %v2506, %v2508
          %v2510 = vrot.slane %v2500, %v2509
          %v2512 = vunpack.c.l.s4 1966171168
          %v2513 = vunpack.c.0.s8 %v2512
          %v2514 = vlaneseq
          %v2515 = vshrl.u32 %v2514, 7
          %v2516 = vsub.s32 %v2513, %v2515
          %v2517 = vrot.slane %v2501, %v2516
          %v2519 = vunpack.c.l.s4 1966171168
          %v2520 = vunpack.c.0.s8 %v2519
          %v2521 = vlaneseq
          %v2522 = vshrl.u32 %v2521, 7
          %v2523 = vsub.s32 %v2520, %v2522
          %v2524 = vrot.slane %v2502, %v2523
          %v2526 = vunpack.c.l.s4 1966171168
          %v2527 = vunpack.c.0.s8 %v2526
          %v2528 = vlaneseq
          %v2529 = vshrl.u32 %v2528, 7
          %v2530 = vsub.s32 %v2527, %v2529
          %v2531 = vrot.slane %v2503, %v2530
          %v2532 = vcombine.low %v2510, %v2517
          %v2533 = vcombine.low %v2524, %v2531
          %v2535 = vunpack.c.l.s4 1966171168
          %v2536 = vunpack.c.0.s8 %v2535
          %v2537 = vlaneseq
          %v2538 = vshrl.u32 %v2537, 7
          %v2539 = vsub.s32 %v2536, %v2538
          %v2540 = vrot.slane %v2532, %v2539
          %v2542 = vunpack.c.l.s4 1966171168
          %v2543 = vunpack.c.0.s8 %v2542
          %v2544 = vlaneseq
          %v2545 = vshrl.u32 %v2544, 7
          %v2546 = vsub.s32 %v2543, %v2545
          %v2547 = vrot.slane %v2533, %v2546
          %v2548 = vcombine.low %v2540, %v2547
          %v2550 = vmax.f32 %v2491, %v2548
          %2551 = vst [vmem:[%s309] sm:$0xff] %v2550
        $region60: #{tpu_custom_call.1} parent=47 // pred_fallthru
          _
        %s2552 = sand.u32 %s196, 1
        %s2553 = scalar_lea.sflag [#allocation4], %s2552
        %s2554 = sand.u32 %s196, 1
        %s2555 = smul.addr %s2554, 8
        %s2556 = scalar_lea.vmem [#allocation5], %s2555
        // Predicated region
        $region61: #{tpu_custom_call.1} parent=47 // pred_check
          %p2557 = pneg %p206
        $region62: #{tpu_custom_call.1} parent=47 // pred_check_branch
          %2559 = sbr.rel (%p2557) target = $region64
        $region63: #{tpu_custom_call.1} parent=47 // pred_region
          %s2561 = ssub.s32 128, 128
          %2562 = vsyncadd %s2553, %s2561
          %s2563 = smul.addr %s26, 8
          %s2564 = smul.addr %s2563, 16
          %s2565 = scalar_lea.hbm %s7, %s2564
          %s2567 = sshll.u32 %s2556, 4
          %s2568 = int_to_ptr.vmem [resolvable:$true] %s2567
          %2570 = dma.vmem_to_hbm [thread:$0]  %s2568, 128, %s2565, %s2553
        $region64: #{tpu_custom_call.1} parent=47 // pred_fallthru
          _
      $region48: #{tpu_custom_call.1} parent=5 // pred_fallthru
        _
      %p2571 = scmp.le.s32.totalorder 2, %s17
      // Predicated region
      $region65: #{tpu_custom_call.1} parent=5 // pred_check
        %p2572 = pneg %p2571
      $region66: #{tpu_custom_call.1} parent=5 // pred_check_branch
        %2574 = sbr.rel (%p2572) target = $region68
      $region67: #{tpu_custom_call.1} parent=5 // pred_region
        %s2575 = ssub.s32 %s17, 2
        // Predicated region
        $region69: #{tpu_custom_call.1} parent=67 // pred_check
          %p2576 = pneg %p212
        $region70: #{tpu_custom_call.1} parent=67 // pred_check_branch
          %2578 = sbr.rel (%p2576) target = $region72
        $region71: #{tpu_custom_call.1} parent=67 // pred_region
          %s2579 = sand.u32 %s197, 1
          %s2580 = scalar_lea.sflag [#allocation4], %s2579
          %s2581 = sand.u32 %s197, 1
          %s2582 = smul.addr %s2581, 8
          %s2583 = scalar_lea.vmem [#allocation5], %s2582
          %2584 = dma.done %s2580, 128
        $region72: #{tpu_custom_call.1} parent=67 // pred_fallthru
          _
      $region68: #{tpu_custom_call.1} parent=5 // pred_fallthru
        _
    $region6: #{tpu_custom_call.1} parent=1 // loop_footer
      %s21 = sadd.s32 1, %s17
    $region7: #{tpu_custom_call.1} parent=1 // loop_footer_branch
      %16 = sbr.rel target = $region3
    $region8: #{tpu_custom_call.1} parent=1 // loop_exit
      _
    %2585 = vsyncpa [#allocation3], 1
    %s2586 = scalar_lea.sflag [#allocation3], 1
    %2587 = vsyncpa %s2586, 1
    %2588 = vsyncpa [#allocation4], 1
    %s2589 = scalar_lea.sflag [#allocation4], 1
    %2590 = vsyncpa %s2589, 1

</llo_original>
